<compile_context>
chip_gen: v5e
topology: v5e:2x2
jax: 0.10.0
libtpu: 0.0.40
codegen_flags: <defaults>
</compile_context>

<pallas_src>
import functools

import jax
import jax.numpy as jnp
import numpy as np
from jax import lax
from jax.experimental import pallas as pl
from jax.experimental.pallas import tpu as pltpu


# ----------------------------- slab layout ----------------------------------


def _round_up8(a):
    return -(-a // 8) * 8


def _slab_layout(H, T, D):
    """Row/lane layout of the single packed weight slab."""
    G = 4 * H
    r_bd = 0                               # block-diag wih0  (T*D, T*G)
    r_b0 = r_bd + _round_up8(T * D)        # tiled b0         (1,   T*G)
    r_rhs = r_b0 + 8                       # blockdiag rec.   (2H,  3*G)
    r_b1 = r_rhs + _round_up8(2 * H)       # b1               (1,   G)
    r_wl = r_b1 + 8                        # wl (padded)      (H,   128)
    r_bl = r_wl + _round_up8(H)            # bl (padded)      (1,   128)
    rows = r_bl + 8
    lanes = max(T * G, 3 * G, 128)
    return dict(r_bd=r_bd, r_b0=r_b0, r_rhs=r_rhs, r_b1=r_b1,
                r_wl=r_wl, r_bl=r_bl, rows=rows, lanes=lanes)


def _permute_gates(w):
    """Reorder gate columns [i, f, g, o] (PyTorch) -> [i, f, o, g]."""
    i, f, g, o = jnp.split(w, 4, axis=-1)
    return jnp.concatenate([i, f, o, g], axis=-1)


def pack_params(params, *, hidden_dim, num_classes, seq_len, n_counters):
    """Pack all weights/biases into one pre-padded (rows, lanes) f32 slab."""
    H, T, D, C = hidden_dim, seq_len, n_counters, num_classes
    G = 4 * H
    (wih0, whh0, b0, wih1, whh1, b1, wl, bl) = params

    wih0p, whh0p = _permute_gates(wih0), _permute_gates(whh0)
    wih1p, whh1p = _permute_gates(wih1), _permute_gates(whh1)
    b0p, b1p = _permute_gates(b0), _permute_gates(b1)

    L = _slab_layout(H, T, D)
    slab = jnp.zeros((L["rows"], L["lanes"]), jnp.float32)

    # T-block-diagonal layer-0 input projection (T*D, T*G)
    bd = jnp.zeros((T * D, T * G), jnp.float32)
    for t in range(T):
        bd = bd.at[t * D:(t + 1) * D, t * G:(t + 1) * G].set(wih0p)
    slab = slab.at[L["r_bd"]:L["r_bd"] + T * D, 0:T * G].set(bd)
    slab = slab.at[L["r_b0"], 0:T * G].set(jnp.tile(b0p, (1, T))[0])

    # recurrent block-diag RHS (2H, 3G): rows 0:H -> [wih1 | whh0], rows H:2H -> whh1
    slab = slab.at[L["r_rhs"]:L["r_rhs"] + H, 0:G].set(wih1p)
    slab = slab.at[L["r_rhs"]:L["r_rhs"] + H, G:2 * G].set(whh0p)
    slab = slab.at[L["r_rhs"] + H:L["r_rhs"] + 2 * H, 2 * G:3 * G].set(whh1p)
    slab = slab.at[L["r_b1"], 0:G].set(b1p[0])

    # classifier, padded to 128 output lanes
    slab = slab.at[L["r_wl"]:L["r_wl"] + H, 0:C].set(wl)
    slab = slab.at[L["r_bl"], 0:C].set(bl[0])
    return slab


# ----------------------------- Pallas kernel --------------------------------


def _rnn_classifier_kernel(
    x_ref,      # (B, T*D)  batch-major flattened input
    slab_ref,   # (rows, lanes)  packed weights (see _slab_layout)
    out_ref,    # (B, 128)  padded logits
    *, hidden_dim, seq_len, batch, n_counters, layout,
):
    H, T, B, D = hidden_dim, seq_len, batch, n_counters
    G = 4 * H
    L = layout

    # ---- layer-0 projection for ALL timesteps: one MXU push, lane-major ----
    x = x_ref[...]                                              # (B, T*D)
    wbd = slab_ref[L["r_bd"]:L["r_bd"] + T * D, 0:T * G]        # (T*D, T*G)
    b0row = slab_ref[L["r_b0"]:L["r_b0"] + 1, 0:T * G]          # (1,   T*G)
    xg0 = jnp.dot(x, wbd, preferred_element_type=jnp.float32) + b0row  # (B, T*G)

    # fused recurrent RHS: blockdiag([wih1 | whh0], whh1) of shape (2H, 3G)
    rhs = slab_ref[L["r_rhs"]:L["r_rhs"] + 2 * H, 0:3 * G]
    # hoist bias broadcast out of the recurrence
    b1 = jnp.broadcast_to(slab_ref[L["r_b1"]:L["r_b1"] + 1, 0:G], (B, G))

    def gate_combine(gates, c_prev):
        # gates: (B, 4H), permuted order [i, f, o, g]
        sg = jax.nn.sigmoid(gates[:, 0:3 * H])   # i, f, o
        gg = jnp.tanh(gates[:, 3 * H:4 * H])     # g
        i = sg[:, 0:H]
        f = sg[:, H:2 * H]
        o = sg[:, 2 * H:3 * H]
        c_new = f * c_prev + i * gg
        return o * jnp.tanh(c_new), c_new

    zero_h = jnp.zeros((B, H), jnp.float32)
    c0, c1 = zero_h, zero_h
    h1_prev = zero_h                            # h1_{t-1}
    hg0 = jnp.zeros((B, G), jnp.float32)        # h0_{t-1} @ whh0 (carried projection)
    mx = None                                   # running max of tanh(h1_t)

    # Fully-unrolled static time loop; all state stays in vregs.
    for t in range(T):
        # layer 0: gates = x_t @ wih0 + b0 (precomputed) + h0_{t-1} @ whh0
        h0, c0 = gate_combine(xg0[:, t * G:(t + 1) * G] + hg0, c0)

        # single fused matmul: [h0_t | h1_{t-1}] @ blockdiag -> (B, 3G)
        lhs = jnp.concatenate([h0, h1_prev], axis=1)            # (B, 2H)
        big = jnp.dot(lhs, rhs, preferred_element_type=jnp.float32)
        hg0 = big[:, G:2 * G]                                   # h0_t @ whh0 (for t+1)

        # layer 1: gates = h0_t @ wih1 + h1_{t-1} @ whh1 + b1
        h1, c1 = gate_combine(big[:, 0:G] + big[:, 2 * G:3 * G] + b1, c1)
        h1_prev = h1

        # tanh + running max over time (== max_pool1d over the full sequence)
        th1 = jnp.tanh(h1)
        mx = th1 if t == 0 else jnp.maximum(mx, th1)

    pooled = jnp.tanh(mx)                                       # (B, H)
    wl = slab_ref[L["r_wl"]:L["r_wl"] + H, 0:128]
    bl = slab_ref[L["r_bl"]:L["r_bl"] + 1, 0:128]
    out_ref[...] = (
        jnp.dot(pooled, wl, preferred_element_type=jnp.float32) + bl
    ).astype(out_ref.dtype)


# ------------------------------- Wrapper -------------------------------------


def rnn_classifier_forward(x, slab, *, hidden_dim, num_classes, seq_len, n_counters):
    """x: (B, T, D) float32 (batch_first). slab: packed weights. -> (B, C)."""
    B = x.shape[0]
    T, D, H, C = seq_len, n_counters, hidden_dim, num_classes
    layout = _slab_layout(H, T, D)

    x_flat = x.reshape(B, T * D)   # [b, t*D + d] == x[b, t, d]

    kernel = functools.partial(
        _rnn_classifier_kernel,
        hidden_dim=H, seq_len=T, batch=B, n_counters=D, layout=layout,
    )

    out_pad = pl.pallas_call(
        kernel,
        out_shape=jax.ShapeDtypeStruct((B, 128), jnp.float32),
        grid=(1,),
        in_specs=[
            pl.BlockSpec((B, T * D), lambda i: (0, 0)),
            pl.BlockSpec((layout["rows"], layout["lanes"]), lambda i: (0, 0)),
        ],
        out_specs=pl.BlockSpec((B, 128), lambda i: (0, 0)),
    )(x_flat, slab)
    return out_pad[:, :C]


# --------------------------- Pure-JAX reference ------------------------------


def _lstm_layer_ref(xs_tm, w_ih, w_hh, b, H):
    B = xs_tm.shape[1]

    def step(carry, xt):
        h, c = carry
        g = xt @ w_ih + h @ w_hh + b
        i = jax.nn.sigmoid(g[:, 0 * H:1 * H])
        f = jax.nn.sigmoid(g[:, 1 * H:2 * H])
        gg = jnp.tanh(g[:, 2 * H:3 * H])
        o = jax.nn.sigmoid(g[:, 3 * H:4 * H])
        c = f * c + i * gg
        h = o * jnp.tanh(c)
        return (h, c), h

    init = (jnp.zeros((B, H), jnp.float32), jnp.zeros((B, H), jnp.float32))
    _, ys = lax.scan(step, init, xs_tm)
    return ys  # (T, B, H)


def rnn_classifier_ref(x, params, *, hidden_dim):
    H = hidden_dim
    (wih0, whh0, b0, wih1, whh1, b1, wl, bl) = params
    xs = jnp.transpose(x, (1, 0, 2))
    y0 = _lstm_layer_ref(xs, wih0, whh0, b0, H)
    y1 = _lstm_layer_ref(y0, wih1, whh1, b1, H)   # (T, B, H)
    pooled = jnp.max(jnp.tanh(y1), axis=0)        # max_pool1d over time
    pooled = jnp.tanh(pooled)
    return pooled @ wl + bl


# ----------------------------------- Main ------------------------------------


def _init_params(key, n_counters, hidden_dim, num_classes):
    """Deterministic synthetic params, PyTorch-style U(-1/sqrt(H), 1/sqrt(H))."""
    H, D, C = hidden_dim, n_counters, num_classes
    k = 1.0 / np.sqrt(H)
    keys = jax.random.split(key, 12)
    u = lambda kk, shape: jax.random.uniform(kk, shape, jnp.float32, -k, k)

    # layer 0: PyTorch stores (4H, in); pre-transpose to (in, 4H)
    wih0 = u(keys[0], (4 * H, D)).T
    whh0 = u(keys[1], (4 * H, H)).T
    b0 = (u(keys[2], (4 * H,)) + u(keys[3], (4 * H,))).reshape(1, 4 * H)
    # layer 1
    wih1 = u(keys[4], (4 * H, H)).T
    whh1 = u(keys[5], (4 * H, H)).T
    b1 = (u(keys[6], (4 * H,)) + u(keys[7], (4 * H,))).reshape(1, 4 * H)
    # hidden2label (Linear): PyTorch (C, H) -> transposed (H, C)
    kl = 1.0 / np.sqrt(H)
    wl = jax.random.uniform(keys[8], (C, H), jnp.float32, -kl, kl).T
    bl = jax.random.uniform(keys[9], (C,), jnp.float32, -kl, kl).reshape(1, C)
    return (wih0, whh0, b0, wih1, whh1, b1, wl, bl)


if __name__ == "__main__":
    hidden_dim = 32
    num_classes = 5
    n_counters = 4
    batch, seq = 2, 8

    key = jax.random.PRNGKey(0)
    kx, kp = jax.random.split(key)
    x = jax.random.normal(kx, (batch, seq, n_counters), jnp.float32)
    params = _init_params(kp, n_counters, hidden_dim, num_classes)

    # one-time weight packing (permute gates, block-diagonalize, pad, stack)
    slab = pack_params(params, hidden_dim=hidden_dim, num_classes=num_classes,
                       seq_len=seq, n_counters=n_counters)

    fwd = jax.jit(functools.partial(
        rnn_classifier_forward, hidden_dim=hidden_dim, num_classes=num_classes,
        seq_len=seq, n_counters=n_counters))

    logits = jax.block_until_ready(fwd(x, slab))

    ref = rnn_classifier_ref(x, params, hidden_dim=hidden_dim)
    np.testing.assert_allclose(
        np.asarray(logits), np.asarray(ref), rtol=1e-5, atol=1e-5
    )

    print("KERNEL_OK")
</pallas_src>

<mosaic_0001>
module attributes {stable_mosaic.version = 11 : i64} {
  func.func @_rnn_classifier_kernel(%arg0: i32, %arg1: memref<2x32xf32, #tpu.memory_space<vmem>>, %arg2: memref<152x1024xf32, #tpu.memory_space<vmem>>, %arg3: memref<2x128xf32, #tpu.memory_space<vmem>>) attributes {dimension_semantics = [#tpu.dimension_semantics<arbitrary>], iteration_bounds = array<i64: 1>, scalar_prefetch = 0 : i64, scratch_operands = 0 : i64, tpu.core_type = #tpu.core_type<tc>, window_params = [{pipeline_mode = #tpu.pipeline_mode<synchronous>, transform_indices = @transform_0, window_bounds = array<i64: 2, 32>}, {pipeline_mode = #tpu.pipeline_mode<synchronous>, transform_indices = @transform_1, window_bounds = array<i64: 152, 1024>}, {pipeline_mode = #tpu.pipeline_mode<synchronous>, transform_indices = @transform_2, window_bounds = array<i64: 2, 128>}]} {
    %c0 = arith.constant 0 : index
    %c0_0 = arith.constant 0 : index
    %0 = vector.load %arg1[%c0, %c0_0] : memref<2x32xf32, #tpu.memory_space<vmem>>, vector<2x32xf32>
    %c0_1 = arith.constant 0 : index
    %c0_2 = arith.constant 0 : index
    %1 = vector.load %arg2[%c0_1, %c0_2] : memref<152x1024xf32, #tpu.memory_space<vmem>>, vector<32x1024xf32>
    %c32 = arith.constant 32 : index
    %c0_3 = arith.constant 0 : index
    %2 = vector.load %arg2[%c32, %c0_3] : memref<152x1024xf32, #tpu.memory_space<vmem>>, vector<1x1024xf32>
    %cst = arith.constant dense<0.000000e+00> : vector<2x1024xf32>
    %3 = tpu.matmul %0, %1, %cst {dimension_numbers = #tpu.dot_dimension_numbers<[1], [0], [0], [1], [0, 0, 1, 1], [], []>} : vector<2x32xf32>, vector<32x1024xf32>, vector<2x1024xf32> -> vector<2x1024xf32>
    %4 = vector.broadcast %2 : vector<1x1024xf32> to vector<2x1024xf32>
    %5 = arith.addf %3, %4 : vector<2x1024xf32>
    %c40 = arith.constant 40 : index
    %c0_4 = arith.constant 0 : index
    %6 = vector.load %arg2[%c40, %c0_4] : memref<152x1024xf32, #tpu.memory_space<vmem>>, vector<64x384xf32>
    %c104 = arith.constant 104 : index
    %c0_5 = arith.constant 0 : index
    %7 = vector.load %arg2[%c104, %c0_5] : memref<152x1024xf32, #tpu.memory_space<vmem>>, vector<1x128xf32>
    %8 = vector.shape_cast %7 : vector<1x128xf32> to vector<1x128xf32>
    %9 = vector.broadcast %8 : vector<1x128xf32> to vector<2x128xf32>
    %cst_6 = arith.constant 0.000000e+00 : f32
    %10 = vector.broadcast %cst_6 : f32 to vector<2x32xf32>
    %cst_7 = arith.constant 0.000000e+00 : f32
    %11 = vector.broadcast %cst_7 : f32 to vector<2x128xf32>
    %12 = vector.extract_strided_slice %5 {offsets = [0, 0], sizes = [2, 128], strides = [1, 1]} : vector<2x1024xf32> to vector<2x128xf32>
    %13 = arith.addf %12, %11 : vector<2x128xf32>
    %14 = vector.extract_strided_slice %13 {offsets = [0, 0], sizes = [2, 96], strides = [1, 1]} : vector<2x128xf32> to vector<2x96xf32>
    %15 = arith.negf %14 : vector<2x96xf32>
    %16 = math.exp %15 : vector<2x96xf32>
    %cst_8 = arith.constant 1.000000e+00 : f32
    %17 = vector.broadcast %cst_8 : f32 to vector<2x96xf32>
    %18 = arith.addf %17, %16 : vector<2x96xf32>
    %19 = arith.divf %17, %18 : vector<2x96xf32>
    %20 = vector.extract_strided_slice %13 {offsets = [0, 96], sizes = [2, 32], strides = [1, 1]} : vector<2x128xf32> to vector<2x32xf32>
    %21 = math.tanh %20 : vector<2x32xf32>
    %22 = vector.extract_strided_slice %19 {offsets = [0, 0], sizes = [2, 32], strides = [1, 1]} : vector<2x96xf32> to vector<2x32xf32>
    %23 = vector.extract_strided_slice %19 {offsets = [0, 32], sizes = [2, 32], strides = [1, 1]} : vector<2x96xf32> to vector<2x32xf32>
    %24 = vector.extract_strided_slice %19 {offsets = [0, 64], sizes = [2, 32], strides = [1, 1]} : vector<2x96xf32> to vector<2x32xf32>
    %25 = arith.mulf %23, %10 : vector<2x32xf32>
    %26 = arith.mulf %22, %21 : vector<2x32xf32>
    %27 = arith.addf %25, %26 : vector<2x32xf32>
    %28 = math.tanh %27 : vector<2x32xf32>
    %29 = arith.mulf %24, %28 : vector<2x32xf32>
    %30 = tpu.concatenate %29, %10 in 1 : vector<2x32xf32>, vector<2x32xf32> -> vector<2x64xf32>
    %cst_9 = arith.constant dense<0.000000e+00> : vector<2x384xf32>
    %31 = tpu.matmul %30, %6, %cst_9 {dimension_numbers = #tpu.dot_dimension_numbers<[1], [0], [0], [1], [0, 0, 1, 1], [], []>} : vector<2x64xf32>, vector<64x384xf32>, vector<2x384xf32> -> vector<2x384xf32>
    %32 = vector.extract_strided_slice %31 {offsets = [0, 128], sizes = [2, 128], strides = [1, 1]} : vector<2x384xf32> to vector<2x128xf32>
    %33 = vector.extract_strided_slice %31 {offsets = [0, 0], sizes = [2, 128], strides = [1, 1]} : vector<2x384xf32> to vector<2x128xf32>
    %34 = vector.extract_strided_slice %31 {offsets = [0, 256], sizes = [2, 128], strides = [1, 1]} : vector<2x384xf32> to vector<2x128xf32>
    %35 = arith.addf %33, %34 : vector<2x128xf32>
    %36 = arith.addf %35, %9 : vector<2x128xf32>
    %37 = vector.extract_strided_slice %36 {offsets = [0, 0], sizes = [2, 96], strides = [1, 1]} : vector<2x128xf32> to vector<2x96xf32>
    %38 = arith.negf %37 : vector<2x96xf32>
    %39 = math.exp %38 : vector<2x96xf32>
    %cst_10 = arith.constant 1.000000e+00 : f32
    %40 = vector.broadcast %cst_10 : f32 to vector<2x96xf32>
    %41 = arith.addf %40, %39 : vector<2x96xf32>
    %42 = arith.divf %40, %41 : vector<2x96xf32>
    %43 = vector.extract_strided_slice %36 {offsets = [0, 96], sizes = [2, 32], strides = [1, 1]} : vector<2x128xf32> to vector<2x32xf32>
    %44 = math.tanh %43 : vector<2x32xf32>
    %45 = vector.extract_strided_slice %42 {offsets = [0, 0], sizes = [2, 32], strides = [1, 1]} : vector<2x96xf32> to vector<2x32xf32>
    %46 = vector.extract_strided_slice %42 {offsets = [0, 32], sizes = [2, 32], strides = [1, 1]} : vector<2x96xf32> to vector<2x32xf32>
    %47 = vector.extract_strided_slice %42 {offsets = [0, 64], sizes = [2, 32], strides = [1, 1]} : vector<2x96xf32> to vector<2x32xf32>
    %48 = arith.mulf %46, %10 : vector<2x32xf32>
    %49 = arith.mulf %45, %44 : vector<2x32xf32>
    %50 = arith.addf %48, %49 : vector<2x32xf32>
    %51 = math.tanh %50 : vector<2x32xf32>
    %52 = arith.mulf %47, %51 : vector<2x32xf32>
    %53 = math.tanh %52 : vector<2x32xf32>
    %54 = vector.extract_strided_slice %5 {offsets = [0, 128], sizes = [2, 128], strides = [1, 1]} : vector<2x1024xf32> to vector<2x128xf32>
    %55 = arith.addf %54, %32 : vector<2x128xf32>
    %56 = vector.extract_strided_slice %55 {offsets = [0, 0], sizes = [2, 96], strides = [1, 1]} : vector<2x128xf32> to vector<2x96xf32>
    %57 = arith.negf %56 : vector<2x96xf32>
    %58 = math.exp %57 : vector<2x96xf32>
    %cst_11 = arith.constant 1.000000e+00 : f32
    %59 = vector.broadcast %cst_11 : f32 to vector<2x96xf32>
    %60 = arith.addf %59, %58 : vector<2x96xf32>
    %61 = arith.divf %59, %60 : vector<2x96xf32>
    %62 = vector.extract_strided_slice %55 {offsets = [0, 96], sizes = [2, 32], strides = [1, 1]} : vector<2x128xf32> to vector<2x32xf32>
    %63 = math.tanh %62 : vector<2x32xf32>
    %64 = vector.extract_strided_slice %61 {offsets = [0, 0], sizes = [2, 32], strides = [1, 1]} : vector<2x96xf32> to vector<2x32xf32>
    %65 = vector.extract_strided_slice %61 {offsets = [0, 32], sizes = [2, 32], strides = [1, 1]} : vector<2x96xf32> to vector<2x32xf32>
    %66 = vector.extract_strided_slice %61 {offsets = [0, 64], sizes = [2, 32], strides = [1, 1]} : vector<2x96xf32> to vector<2x32xf32>
    %67 = arith.mulf %65, %27 : vector<2x32xf32>
    %68 = arith.mulf %64, %63 : vector<2x32xf32>
    %69 = arith.addf %67, %68 : vector<2x32xf32>
    %70 = math.tanh %69 : vector<2x32xf32>
    %71 = arith.mulf %66, %70 : vector<2x32xf32>
    %72 = tpu.concatenate %71, %52 in 1 : vector<2x32xf32>, vector<2x32xf32> -> vector<2x64xf32>
    %cst_12 = arith.constant dense<0.000000e+00> : vector<2x384xf32>
    %73 = tpu.matmul %72, %6, %cst_12 {dimension_numbers = #tpu.dot_dimension_numbers<[1], [0], [0], [1], [0, 0, 1, 1], [], []>} : vector<2x64xf32>, vector<64x384xf32>, vector<2x384xf32> -> vector<2x384xf32>
    %74 = vector.extract_strided_slice %73 {offsets = [0, 128], sizes = [2, 128], strides = [1, 1]} : vector<2x384xf32> to vector<2x128xf32>
    %75 = vector.extract_strided_slice %73 {offsets = [0, 0], sizes = [2, 128], strides = [1, 1]} : vector<2x384xf32> to vector<2x128xf32>
    %76 = vector.extract_strided_slice %73 {offsets = [0, 256], sizes = [2, 128], strides = [1, 1]} : vector<2x384xf32> to vector<2x128xf32>
    %77 = arith.addf %75, %76 : vector<2x128xf32>
    %78 = arith.addf %77, %9 : vector<2x128xf32>
    %79 = vector.extract_strided_slice %78 {offsets = [0, 0], sizes = [2, 96], strides = [1, 1]} : vector<2x128xf32> to vector<2x96xf32>
    %80 = arith.negf %79 : vector<2x96xf32>
    %81 = math.exp %80 : vector<2x96xf32>
    %cst_13 = arith.constant 1.000000e+00 : f32
    %82 = vector.broadcast %cst_13 : f32 to vector<2x96xf32>
    %83 = arith.addf %82, %81 : vector<2x96xf32>
    %84 = arith.divf %82, %83 : vector<2x96xf32>
    %85 = vector.extract_strided_slice %78 {offsets = [0, 96], sizes = [2, 32], strides = [1, 1]} : vector<2x128xf32> to vector<2x32xf32>
    %86 = math.tanh %85 : vector<2x32xf32>
    %87 = vector.extract_strided_slice %84 {offsets = [0, 0], sizes = [2, 32], strides = [1, 1]} : vector<2x96xf32> to vector<2x32xf32>
    %88 = vector.extract_strided_slice %84 {offsets = [0, 32], sizes = [2, 32], strides = [1, 1]} : vector<2x96xf32> to vector<2x32xf32>
    %89 = vector.extract_strided_slice %84 {offsets = [0, 64], sizes = [2, 32], strides = [1, 1]} : vector<2x96xf32> to vector<2x32xf32>
    %90 = arith.mulf %88, %50 : vector<2x32xf32>
    %91 = arith.mulf %87, %86 : vector<2x32xf32>
    %92 = arith.addf %90, %91 : vector<2x32xf32>
    %93 = math.tanh %92 : vector<2x32xf32>
    %94 = arith.mulf %89, %93 : vector<2x32xf32>
    %95 = math.tanh %94 : vector<2x32xf32>
    %96 = arith.maximumf %53, %95 : vector<2x32xf32>
    %97 = vector.extract_strided_slice %5 {offsets = [0, 256], sizes = [2, 128], strides = [1, 1]} : vector<2x1024xf32> to vector<2x128xf32>
    %98 = arith.addf %97, %74 : vector<2x128xf32>
    %99 = vector.extract_strided_slice %98 {offsets = [0, 0], sizes = [2, 96], strides = [1, 1]} : vector<2x128xf32> to vector<2x96xf32>
    %100 = arith.negf %99 : vector<2x96xf32>
    %101 = math.exp %100 : vector<2x96xf32>
    %cst_14 = arith.constant 1.000000e+00 : f32
    %102 = vector.broadcast %cst_14 : f32 to vector<2x96xf32>
    %103 = arith.addf %102, %101 : vector<2x96xf32>
    %104 = arith.divf %102, %103 : vector<2x96xf32>
    %105 = vector.extract_strided_slice %98 {offsets = [0, 96], sizes = [2, 32], strides = [1, 1]} : vector<2x128xf32> to vector<2x32xf32>
    %106 = math.tanh %105 : vector<2x32xf32>
    %107 = vector.extract_strided_slice %104 {offsets = [0, 0], sizes = [2, 32], strides = [1, 1]} : vector<2x96xf32> to vector<2x32xf32>
    %108 = vector.extract_strided_slice %104 {offsets = [0, 32], sizes = [2, 32], strides = [1, 1]} : vector<2x96xf32> to vector<2x32xf32>
    %109 = vector.extract_strided_slice %104 {offsets = [0, 64], sizes = [2, 32], strides = [1, 1]} : vector<2x96xf32> to vector<2x32xf32>
    %110 = arith.mulf %108, %69 : vector<2x32xf32>
    %111 = arith.mulf %107, %106 : vector<2x32xf32>
    %112 = arith.addf %110, %111 : vector<2x32xf32>
    %113 = math.tanh %112 : vector<2x32xf32>
    %114 = arith.mulf %109, %113 : vector<2x32xf32>
    %115 = tpu.concatenate %114, %94 in 1 : vector<2x32xf32>, vector<2x32xf32> -> vector<2x64xf32>
    %cst_15 = arith.constant dense<0.000000e+00> : vector<2x384xf32>
    %116 = tpu.matmul %115, %6, %cst_15 {dimension_numbers = #tpu.dot_dimension_numbers<[1], [0], [0], [1], [0, 0, 1, 1], [], []>} : vector<2x64xf32>, vector<64x384xf32>, vector<2x384xf32> -> vector<2x384xf32>
    %117 = vector.extract_strided_slice %116 {offsets = [0, 128], sizes = [2, 128], strides = [1, 1]} : vector<2x384xf32> to vector<2x128xf32>
    %118 = vector.extract_strided_slice %116 {offsets = [0, 0], sizes = [2, 128], strides = [1, 1]} : vector<2x384xf32> to vector<2x128xf32>
    %119 = vector.extract_strided_slice %116 {offsets = [0, 256], sizes = [2, 128], strides = [1, 1]} : vector<2x384xf32> to vector<2x128xf32>
    %120 = arith.addf %118, %119 : vector<2x128xf32>
    %121 = arith.addf %120, %9 : vector<2x128xf32>
    %122 = vector.extract_strided_slice %121 {offsets = [0, 0], sizes = [2, 96], strides = [1, 1]} : vector<2x128xf32> to vector<2x96xf32>
    %123 = arith.negf %122 : vector<2x96xf32>
    %124 = math.exp %123 : vector<2x96xf32>
    %cst_16 = arith.constant 1.000000e+00 : f32
    %125 = vector.broadcast %cst_16 : f32 to vector<2x96xf32>
    %126 = arith.addf %125, %124 : vector<2x96xf32>
    %127 = arith.divf %125, %126 : vector<2x96xf32>
    %128 = vector.extract_strided_slice %121 {offsets = [0, 96], sizes = [2, 32], strides = [1, 1]} : vector<2x128xf32> to vector<2x32xf32>
    %129 = math.tanh %128 : vector<2x32xf32>
    %130 = vector.extract_strided_slice %127 {offsets = [0, 0], sizes = [2, 32], strides = [1, 1]} : vector<2x96xf32> to vector<2x32xf32>
    %131 = vector.extract_strided_slice %127 {offsets = [0, 32], sizes = [2, 32], strides = [1, 1]} : vector<2x96xf32> to vector<2x32xf32>
    %132 = vector.extract_strided_slice %127 {offsets = [0, 64], sizes = [2, 32], strides = [1, 1]} : vector<2x96xf32> to vector<2x32xf32>
    %133 = arith.mulf %131, %92 : vector<2x32xf32>
    %134 = arith.mulf %130, %129 : vector<2x32xf32>
    %135 = arith.addf %133, %134 : vector<2x32xf32>
    %136 = math.tanh %135 : vector<2x32xf32>
    %137 = arith.mulf %132, %136 : vector<2x32xf32>
    %138 = math.tanh %137 : vector<2x32xf32>
    %139 = arith.maximumf %96, %138 : vector<2x32xf32>
    %140 = vector.extract_strided_slice %5 {offsets = [0, 384], sizes = [2, 128], strides = [1, 1]} : vector<2x1024xf32> to vector<2x128xf32>
    %141 = arith.addf %140, %117 : vector<2x128xf32>
    %142 = vector.extract_strided_slice %141 {offsets = [0, 0], sizes = [2, 96], strides = [1, 1]} : vector<2x128xf32> to vector<2x96xf32>
    %143 = arith.negf %142 : vector<2x96xf32>
    %144 = math.exp %143 : vector<2x96xf32>
    %cst_17 = arith.constant 1.000000e+00 : f32
    %145 = vector.broadcast %cst_17 : f32 to vector<2x96xf32>
    %146 = arith.addf %145, %144 : vector<2x96xf32>
    %147 = arith.divf %145, %146 : vector<2x96xf32>
    %148 = vector.extract_strided_slice %141 {offsets = [0, 96], sizes = [2, 32], strides = [1, 1]} : vector<2x128xf32> to vector<2x32xf32>
    %149 = math.tanh %148 : vector<2x32xf32>
    %150 = vector.extract_strided_slice %147 {offsets = [0, 0], sizes = [2, 32], strides = [1, 1]} : vector<2x96xf32> to vector<2x32xf32>
    %151 = vector.extract_strided_slice %147 {offsets = [0, 32], sizes = [2, 32], strides = [1, 1]} : vector<2x96xf32> to vector<2x32xf32>
    %152 = vector.extract_strided_slice %147 {offsets = [0, 64], sizes = [2, 32], strides = [1, 1]} : vector<2x96xf32> to vector<2x32xf32>
    %153 = arith.mulf %151, %112 : vector<2x32xf32>
    %154 = arith.mulf %150, %149 : vector<2x32xf32>
    %155 = arith.addf %153, %154 : vector<2x32xf32>
    %156 = math.tanh %155 : vector<2x32xf32>
    %157 = arith.mulf %152, %156 : vector<2x32xf32>
    %158 = tpu.concatenate %157, %137 in 1 : vector<2x32xf32>, vector<2x32xf32> -> vector<2x64xf32>
    %cst_18 = arith.constant dense<0.000000e+00> : vector<2x384xf32>
    %159 = tpu.matmul %158, %6, %cst_18 {dimension_numbers = #tpu.dot_dimension_numbers<[1], [0], [0], [1], [0, 0, 1, 1], [], []>} : vector<2x64xf32>, vector<64x384xf32>, vector<2x384xf32> -> vector<2x384xf32>
    %160 = vector.extract_strided_slice %159 {offsets = [0, 128], sizes = [2, 128], strides = [1, 1]} : vector<2x384xf32> to vector<2x128xf32>
    %161 = vector.extract_strided_slice %159 {offsets = [0, 0], sizes = [2, 128], strides = [1, 1]} : vector<2x384xf32> to vector<2x128xf32>
    %162 = vector.extract_strided_slice %159 {offsets = [0, 256], sizes = [2, 128], strides = [1, 1]} : vector<2x384xf32> to vector<2x128xf32>
    %163 = arith.addf %161, %162 : vector<2x128xf32>
    %164 = arith.addf %163, %9 : vector<2x128xf32>
    %165 = vector.extract_strided_slice %164 {offsets = [0, 0], sizes = [2, 96], strides = [1, 1]} : vector<2x128xf32> to vector<2x96xf32>
    %166 = arith.negf %165 : vector<2x96xf32>
    %167 = math.exp %166 : vector<2x96xf32>
    %cst_19 = arith.constant 1.000000e+00 : f32
    %168 = vector.broadcast %cst_19 : f32 to vector<2x96xf32>
    %169 = arith.addf %168, %167 : vector<2x96xf32>
    %170 = arith.divf %168, %169 : vector<2x96xf32>
    %171 = vector.extract_strided_slice %164 {offsets = [0, 96], sizes = [2, 32], strides = [1, 1]} : vector<2x128xf32> to vector<2x32xf32>
    %172 = math.tanh %171 : vector<2x32xf32>
    %173 = vector.extract_strided_slice %170 {offsets = [0, 0], sizes = [2, 32], strides = [1, 1]} : vector<2x96xf32> to vector<2x32xf32>
    %174 = vector.extract_strided_slice %170 {offsets = [0, 32], sizes = [2, 32], strides = [1, 1]} : vector<2x96xf32> to vector<2x32xf32>
    %175 = vector.extract_strided_slice %170 {offsets = [0, 64], sizes = [2, 32], strides = [1, 1]} : vector<2x96xf32> to vector<2x32xf32>
    %176 = arith.mulf %174, %135 : vector<2x32xf32>
    %177 = arith.mulf %173, %172 : vector<2x32xf32>
    %178 = arith.addf %176, %177 : vector<2x32xf32>
    %179 = math.tanh %178 : vector<2x32xf32>
    %180 = arith.mulf %175, %179 : vector<2x32xf32>
    %181 = math.tanh %180 : vector<2x32xf32>
    %182 = arith.maximumf %139, %181 : vector<2x32xf32>
    %183 = vector.extract_strided_slice %5 {offsets = [0, 512], sizes = [2, 128], strides = [1, 1]} : vector<2x1024xf32> to vector<2x128xf32>
    %184 = arith.addf %183, %160 : vector<2x128xf32>
    %185 = vector.extract_strided_slice %184 {offsets = [0, 0], sizes = [2, 96], strides = [1, 1]} : vector<2x128xf32> to vector<2x96xf32>
    %186 = arith.negf %185 : vector<2x96xf32>
    %187 = math.exp %186 : vector<2x96xf32>
    %cst_20 = arith.constant 1.000000e+00 : f32
    %188 = vector.broadcast %cst_20 : f32 to vector<2x96xf32>
    %189 = arith.addf %188, %187 : vector<2x96xf32>
    %190 = arith.divf %188, %189 : vector<2x96xf32>
    %191 = vector.extract_strided_slice %184 {offsets = [0, 96], sizes = [2, 32], strides = [1, 1]} : vector<2x128xf32> to vector<2x32xf32>
    %192 = math.tanh %191 : vector<2x32xf32>
    %193 = vector.extract_strided_slice %190 {offsets = [0, 0], sizes = [2, 32], strides = [1, 1]} : vector<2x96xf32> to vector<2x32xf32>
    %194 = vector.extract_strided_slice %190 {offsets = [0, 32], sizes = [2, 32], strides = [1, 1]} : vector<2x96xf32> to vector<2x32xf32>
    %195 = vector.extract_strided_slice %190 {offsets = [0, 64], sizes = [2, 32], strides = [1, 1]} : vector<2x96xf32> to vector<2x32xf32>
    %196 = arith.mulf %194, %155 : vector<2x32xf32>
    %197 = arith.mulf %193, %192 : vector<2x32xf32>
    %198 = arith.addf %196, %197 : vector<2x32xf32>
    %199 = math.tanh %198 : vector<2x32xf32>
    %200 = arith.mulf %195, %199 : vector<2x32xf32>
    %201 = tpu.concatenate %200, %180 in 1 : vector<2x32xf32>, vector<2x32xf32> -> vector<2x64xf32>
    %cst_21 = arith.constant dense<0.000000e+00> : vector<2x384xf32>
    %202 = tpu.matmul %201, %6, %cst_21 {dimension_numbers = #tpu.dot_dimension_numbers<[1], [0], [0], [1], [0, 0, 1, 1], [], []>} : vector<2x64xf32>, vector<64x384xf32>, vector<2x384xf32> -> vector<2x384xf32>
    %203 = vector.extract_strided_slice %202 {offsets = [0, 128], sizes = [2, 128], strides = [1, 1]} : vector<2x384xf32> to vector<2x128xf32>
    %204 = vector.extract_strided_slice %202 {offsets = [0, 0], sizes = [2, 128], strides = [1, 1]} : vector<2x384xf32> to vector<2x128xf32>
    %205 = vector.extract_strided_slice %202 {offsets = [0, 256], sizes = [2, 128], strides = [1, 1]} : vector<2x384xf32> to vector<2x128xf32>
    %206 = arith.addf %204, %205 : vector<2x128xf32>
    %207 = arith.addf %206, %9 : vector<2x128xf32>
    %208 = vector.extract_strided_slice %207 {offsets = [0, 0], sizes = [2, 96], strides = [1, 1]} : vector<2x128xf32> to vector<2x96xf32>
    %209 = arith.negf %208 : vector<2x96xf32>
    %210 = math.exp %209 : vector<2x96xf32>
    %cst_22 = arith.constant 1.000000e+00 : f32
    %211 = vector.broadcast %cst_22 : f32 to vector<2x96xf32>
    %212 = arith.addf %211, %210 : vector<2x96xf32>
    %213 = arith.divf %211, %212 : vector<2x96xf32>
    %214 = vector.extract_strided_slice %207 {offsets = [0, 96], sizes = [2, 32], strides = [1, 1]} : vector<2x128xf32> to vector<2x32xf32>
    %215 = math.tanh %214 : vector<2x32xf32>
    %216 = vector.extract_strided_slice %213 {offsets = [0, 0], sizes = [2, 32], strides = [1, 1]} : vector<2x96xf32> to vector<2x32xf32>
    %217 = vector.extract_strided_slice %213 {offsets = [0, 32], sizes = [2, 32], strides = [1, 1]} : vector<2x96xf32> to vector<2x32xf32>
    %218 = vector.extract_strided_slice %213 {offsets = [0, 64], sizes = [2, 32], strides = [1, 1]} : vector<2x96xf32> to vector<2x32xf32>
    %219 = arith.mulf %217, %178 : vector<2x32xf32>
    %220 = arith.mulf %216, %215 : vector<2x32xf32>
    %221 = arith.addf %219, %220 : vector<2x32xf32>
    %222 = math.tanh %221 : vector<2x32xf32>
    %223 = arith.mulf %218, %222 : vector<2x32xf32>
    %224 = math.tanh %223 : vector<2x32xf32>
    %225 = arith.maximumf %182, %224 : vector<2x32xf32>
    %226 = vector.extract_strided_slice %5 {offsets = [0, 640], sizes = [2, 128], strides = [1, 1]} : vector<2x1024xf32> to vector<2x128xf32>
    %227 = arith.addf %226, %203 : vector<2x128xf32>
    %228 = vector.extract_strided_slice %227 {offsets = [0, 0], sizes = [2, 96], strides = [1, 1]} : vector<2x128xf32> to vector<2x96xf32>
    %229 = arith.negf %228 : vector<2x96xf32>
    %230 = math.exp %229 : vector<2x96xf32>
    %cst_23 = arith.constant 1.000000e+00 : f32
    %231 = vector.broadcast %cst_23 : f32 to vector<2x96xf32>
    %232 = arith.addf %231, %230 : vector<2x96xf32>
    %233 = arith.divf %231, %232 : vector<2x96xf32>
    %234 = vector.extract_strided_slice %227 {offsets = [0, 96], sizes = [2, 32], strides = [1, 1]} : vector<2x128xf32> to vector<2x32xf32>
    %235 = math.tanh %234 : vector<2x32xf32>
    %236 = vector.extract_strided_slice %233 {offsets = [0, 0], sizes = [2, 32], strides = [1, 1]} : vector<2x96xf32> to vector<2x32xf32>
    %237 = vector.extract_strided_slice %233 {offsets = [0, 32], sizes = [2, 32], strides = [1, 1]} : vector<2x96xf32> to vector<2x32xf32>
    %238 = vector.extract_strided_slice %233 {offsets = [0, 64], sizes = [2, 32], strides = [1, 1]} : vector<2x96xf32> to vector<2x32xf32>
    %239 = arith.mulf %237, %198 : vector<2x32xf32>
    %240 = arith.mulf %236, %235 : vector<2x32xf32>
    %241 = arith.addf %239, %240 : vector<2x32xf32>
    %242 = math.tanh %241 : vector<2x32xf32>
    %243 = arith.mulf %238, %242 : vector<2x32xf32>
    %244 = tpu.concatenate %243, %223 in 1 : vector<2x32xf32>, vector<2x32xf32> -> vector<2x64xf32>
    %cst_24 = arith.constant dense<0.000000e+00> : vector<2x384xf32>
    %245 = tpu.matmul %244, %6, %cst_24 {dimension_numbers = #tpu.dot_dimension_numbers<[1], [0], [0], [1], [0, 0, 1, 1], [], []>} : vector<2x64xf32>, vector<64x384xf32>, vector<2x384xf32> -> vector<2x384xf32>
    %246 = vector.extract_strided_slice %245 {offsets = [0, 128], sizes = [2, 128], strides = [1, 1]} : vector<2x384xf32> to vector<2x128xf32>
    %247 = vector.extract_strided_slice %245 {offsets = [0, 0], sizes = [2, 128], strides = [1, 1]} : vector<2x384xf32> to vector<2x128xf32>
    %248 = vector.extract_strided_slice %245 {offsets = [0, 256], sizes = [2, 128], strides = [1, 1]} : vector<2x384xf32> to vector<2x128xf32>
    %249 = arith.addf %247, %248 : vector<2x128xf32>
    %250 = arith.addf %249, %9 : vector<2x128xf32>
    %251 = vector.extract_strided_slice %250 {offsets = [0, 0], sizes = [2, 96], strides = [1, 1]} : vector<2x128xf32> to vector<2x96xf32>
    %252 = arith.negf %251 : vector<2x96xf32>
    %253 = math.exp %252 : vector<2x96xf32>
    %cst_25 = arith.constant 1.000000e+00 : f32
    %254 = vector.broadcast %cst_25 : f32 to vector<2x96xf32>
    %255 = arith.addf %254, %253 : vector<2x96xf32>
    %256 = arith.divf %254, %255 : vector<2x96xf32>
    %257 = vector.extract_strided_slice %250 {offsets = [0, 96], sizes = [2, 32], strides = [1, 1]} : vector<2x128xf32> to vector<2x32xf32>
    %258 = math.tanh %257 : vector<2x32xf32>
    %259 = vector.extract_strided_slice %256 {offsets = [0, 0], sizes = [2, 32], strides = [1, 1]} : vector<2x96xf32> to vector<2x32xf32>
    %260 = vector.extract_strided_slice %256 {offsets = [0, 32], sizes = [2, 32], strides = [1, 1]} : vector<2x96xf32> to vector<2x32xf32>
    %261 = vector.extract_strided_slice %256 {offsets = [0, 64], sizes = [2, 32], strides = [1, 1]} : vector<2x96xf32> to vector<2x32xf32>
    %262 = arith.mulf %260, %221 : vector<2x32xf32>
    %263 = arith.mulf %259, %258 : vector<2x32xf32>
    %264 = arith.addf %262, %263 : vector<2x32xf32>
    %265 = math.tanh %264 : vector<2x32xf32>
    %266 = arith.mulf %261, %265 : vector<2x32xf32>
    %267 = math.tanh %266 : vector<2x32xf32>
    %268 = arith.maximumf %225, %267 : vector<2x32xf32>
    %269 = vector.extract_strided_slice %5 {offsets = [0, 768], sizes = [2, 128], strides = [1, 1]} : vector<2x1024xf32> to vector<2x128xf32>
    %270 = arith.addf %269, %246 : vector<2x128xf32>
    %271 = vector.extract_strided_slice %270 {offsets = [0, 0], sizes = [2, 96], strides = [1, 1]} : vector<2x128xf32> to vector<2x96xf32>
    %272 = arith.negf %271 : vector<2x96xf32>
    %273 = math.exp %272 : vector<2x96xf32>
    %cst_26 = arith.constant 1.000000e+00 : f32
    %274 = vector.broadcast %cst_26 : f32 to vector<2x96xf32>
    %275 = arith.addf %274, %273 : vector<2x96xf32>
    %276 = arith.divf %274, %275 : vector<2x96xf32>
    %277 = vector.extract_strided_slice %270 {offsets = [0, 96], sizes = [2, 32], strides = [1, 1]} : vector<2x128xf32> to vector<2x32xf32>
    %278 = math.tanh %277 : vector<2x32xf32>
    %279 = vector.extract_strided_slice %276 {offsets = [0, 0], sizes = [2, 32], strides = [1, 1]} : vector<2x96xf32> to vector<2x32xf32>
    %280 = vector.extract_strided_slice %276 {offsets = [0, 32], sizes = [2, 32], strides = [1, 1]} : vector<2x96xf32> to vector<2x32xf32>
    %281 = vector.extract_strided_slice %276 {offsets = [0, 64], sizes = [2, 32], strides = [1, 1]} : vector<2x96xf32> to vector<2x32xf32>
    %282 = arith.mulf %280, %241 : vector<2x32xf32>
    %283 = arith.mulf %279, %278 : vector<2x32xf32>
    %284 = arith.addf %282, %283 : vector<2x32xf32>
    %285 = math.tanh %284 : vector<2x32xf32>
    %286 = arith.mulf %281, %285 : vector<2x32xf32>
    %287 = tpu.concatenate %286, %266 in 1 : vector<2x32xf32>, vector<2x32xf32> -> vector<2x64xf32>
    %cst_27 = arith.constant dense<0.000000e+00> : vector<2x384xf32>
    %288 = tpu.matmul %287, %6, %cst_27 {dimension_numbers = #tpu.dot_dimension_numbers<[1], [0], [0], [1], [0, 0, 1, 1], [], []>} : vector<2x64xf32>, vector<64x384xf32>, vector<2x384xf32> -> vector<2x384xf32>
    %289 = vector.extract_strided_slice %288 {offsets = [0, 128], sizes = [2, 128], strides = [1, 1]} : vector<2x384xf32> to vector<2x128xf32>
    %290 = vector.extract_strided_slice %288 {offsets = [0, 0], sizes = [2, 128], strides = [1, 1]} : vector<2x384xf32> to vector<2x128xf32>
    %291 = vector.extract_strided_slice %288 {offsets = [0, 256], sizes = [2, 128], strides = [1, 1]} : vector<2x384xf32> to vector<2x128xf32>
    %292 = arith.addf %290, %291 : vector<2x128xf32>
    %293 = arith.addf %292, %9 : vector<2x128xf32>
    %294 = vector.extract_strided_slice %293 {offsets = [0, 0], sizes = [2, 96], strides = [1, 1]} : vector<2x128xf32> to vector<2x96xf32>
    %295 = arith.negf %294 : vector<2x96xf32>
    %296 = math.exp %295 : vector<2x96xf32>
    %cst_28 = arith.constant 1.000000e+00 : f32
    %297 = vector.broadcast %cst_28 : f32 to vector<2x96xf32>
    %298 = arith.addf %297, %296 : vector<2x96xf32>
    %299 = arith.divf %297, %298 : vector<2x96xf32>
    %300 = vector.extract_strided_slice %293 {offsets = [0, 96], sizes = [2, 32], strides = [1, 1]} : vector<2x128xf32> to vector<2x32xf32>
    %301 = math.tanh %300 : vector<2x32xf32>
    %302 = vector.extract_strided_slice %299 {offsets = [0, 0], sizes = [2, 32], strides = [1, 1]} : vector<2x96xf32> to vector<2x32xf32>
    %303 = vector.extract_strided_slice %299 {offsets = [0, 32], sizes = [2, 32], strides = [1, 1]} : vector<2x96xf32> to vector<2x32xf32>
    %304 = vector.extract_strided_slice %299 {offsets = [0, 64], sizes = [2, 32], strides = [1, 1]} : vector<2x96xf32> to vector<2x32xf32>
    %305 = arith.mulf %303, %264 : vector<2x32xf32>
    %306 = arith.mulf %302, %301 : vector<2x32xf32>
    %307 = arith.addf %305, %306 : vector<2x32xf32>
    %308 = math.tanh %307 : vector<2x32xf32>
    %309 = arith.mulf %304, %308 : vector<2x32xf32>
    %310 = math.tanh %309 : vector<2x32xf32>
    %311 = arith.maximumf %268, %310 : vector<2x32xf32>
    %312 = vector.extract_strided_slice %5 {offsets = [0, 896], sizes = [2, 128], strides = [1, 1]} : vector<2x1024xf32> to vector<2x128xf32>
    %313 = arith.addf %312, %289 : vector<2x128xf32>
    %314 = vector.extract_strided_slice %313 {offsets = [0, 0], sizes = [2, 96], strides = [1, 1]} : vector<2x128xf32> to vector<2x96xf32>
    %315 = arith.negf %314 : vector<2x96xf32>
    %316 = math.exp %315 : vector<2x96xf32>
    %cst_29 = arith.constant 1.000000e+00 : f32
    %317 = vector.broadcast %cst_29 : f32 to vector<2x96xf32>
    %318 = arith.addf %317, %316 : vector<2x96xf32>
    %319 = arith.divf %317, %318 : vector<2x96xf32>
    %320 = vector.extract_strided_slice %313 {offsets = [0, 96], sizes = [2, 32], strides = [1, 1]} : vector<2x128xf32> to vector<2x32xf32>
    %321 = math.tanh %320 : vector<2x32xf32>
    %322 = vector.extract_strided_slice %319 {offsets = [0, 0], sizes = [2, 32], strides = [1, 1]} : vector<2x96xf32> to vector<2x32xf32>
    %323 = vector.extract_strided_slice %319 {offsets = [0, 32], sizes = [2, 32], strides = [1, 1]} : vector<2x96xf32> to vector<2x32xf32>
    %324 = vector.extract_strided_slice %319 {offsets = [0, 64], sizes = [2, 32], strides = [1, 1]} : vector<2x96xf32> to vector<2x32xf32>
    %325 = arith.mulf %323, %284 : vector<2x32xf32>
    %326 = arith.mulf %322, %321 : vector<2x32xf32>
    %327 = arith.addf %325, %326 : vector<2x32xf32>
    %328 = math.tanh %327 : vector<2x32xf32>
    %329 = arith.mulf %324, %328 : vector<2x32xf32>
    %330 = tpu.concatenate %329, %309 in 1 : vector<2x32xf32>, vector<2x32xf32> -> vector<2x64xf32>
    %cst_30 = arith.constant dense<0.000000e+00> : vector<2x384xf32>
    %331 = tpu.matmul %330, %6, %cst_30 {dimension_numbers = #tpu.dot_dimension_numbers<[1], [0], [0], [1], [0, 0, 1, 1], [], []>} : vector<2x64xf32>, vector<64x384xf32>, vector<2x384xf32> -> vector<2x384xf32>
    %332 = vector.extract_strided_slice %331 {offsets = [0, 0], sizes = [2, 128], strides = [1, 1]} : vector<2x384xf32> to vector<2x128xf32>
    %333 = vector.extract_strided_slice %331 {offsets = [0, 256], sizes = [2, 128], strides = [1, 1]} : vector<2x384xf32> to vector<2x128xf32>
    %334 = arith.addf %332, %333 : vector<2x128xf32>
    %335 = arith.addf %334, %9 : vector<2x128xf32>
    %336 = vector.extract_strided_slice %335 {offsets = [0, 0], sizes = [2, 96], strides = [1, 1]} : vector<2x128xf32> to vector<2x96xf32>
    %337 = arith.negf %336 : vector<2x96xf32>
    %338 = math.exp %337 : vector<2x96xf32>
    %cst_31 = arith.constant 1.000000e+00 : f32
    %339 = vector.broadcast %cst_31 : f32 to vector<2x96xf32>
    %340 = arith.addf %339, %338 : vector<2x96xf32>
    %341 = arith.divf %339, %340 : vector<2x96xf32>
    %342 = vector.extract_strided_slice %335 {offsets = [0, 96], sizes = [2, 32], strides = [1, 1]} : vector<2x128xf32> to vector<2x32xf32>
    %343 = math.tanh %342 : vector<2x32xf32>
    %344 = vector.extract_strided_slice %341 {offsets = [0, 0], sizes = [2, 32], strides = [1, 1]} : vector<2x96xf32> to vector<2x32xf32>
    %345 = vector.extract_strided_slice %341 {offsets = [0, 32], sizes = [2, 32], strides = [1, 1]} : vector<2x96xf32> to vector<2x32xf32>
    %346 = vector.extract_strided_slice %341 {offsets = [0, 64], sizes = [2, 32], strides = [1, 1]} : vector<2x96xf32> to vector<2x32xf32>
    %347 = arith.mulf %345, %307 : vector<2x32xf32>
    %348 = arith.mulf %344, %343 : vector<2x32xf32>
    %349 = arith.addf %347, %348 : vector<2x32xf32>
    %350 = math.tanh %349 : vector<2x32xf32>
    %351 = arith.mulf %346, %350 : vector<2x32xf32>
    %352 = math.tanh %351 : vector<2x32xf32>
    %353 = arith.maximumf %311, %352 : vector<2x32xf32>
    %354 = math.tanh %353 : vector<2x32xf32>
    %c112 = arith.constant 112 : index
    %c0_32 = arith.constant 0 : index
    %355 = vector.load %arg2[%c112, %c0_32] : memref<152x1024xf32, #tpu.memory_space<vmem>>, vector<32x128xf32>
    %c144 = arith.constant 144 : index
    %c0_33 = arith.constant 0 : index
    %356 = vector.load %arg2[%c144, %c0_33] : memref<152x1024xf32, #tpu.memory_space<vmem>>, vector<1x128xf32>
    %cst_34 = arith.constant dense<0.000000e+00> : vector<2x128xf32>
    %357 = tpu.matmul %354, %355, %cst_34 {dimension_numbers = #tpu.dot_dimension_numbers<[1], [0], [0], [1], [0, 0, 1, 1], [], []>} : vector<2x32xf32>, vector<32x128xf32>, vector<2x128xf32> -> vector<2x128xf32>
    %358 = vector.broadcast %356 : vector<1x128xf32> to vector<2x128xf32>
    %359 = arith.addf %357, %358 : vector<2x128xf32>
    %c0_35 = arith.constant 0 : index
    %c0_36 = arith.constant 0 : index
    %360 = vector.load %arg3[%c0_35, %c0_36] : memref<2x128xf32, #tpu.memory_space<vmem>>, vector<2x128xf32>
    tpu.vector_store %arg3[%c0_35, %c0_36], %359 {strides = array<i32>} : memref<2x128xf32, #tpu.memory_space<vmem>>, vector<2x128xf32>,
    return
  }
  func.func @transform_0(%arg0: i32) -> (i32, i32) {
    %c0_i32 = arith.constant 0 : i32
    %c0_i32_0 = arith.constant 0 : i32
    %c0_i32_1 = arith.constant 0 : i32
    return %c0_i32, %c0_i32_0 : i32, i32
  }
  func.func @transform_1(%arg0: i32) -> (i32, i32) {
    %c0_i32 = arith.constant 0 : i32
    %c0_i32_0 = arith.constant 0 : i32
    %c0_i32_1 = arith.constant 0 : i32
    return %c0_i32, %c0_i32_0 : i32, i32
  }
  func.func @transform_2(%arg0: i32) -> (i32, i32) {
    %c0_i32 = arith.constant 0 : i32
    %c0_i32_0 = arith.constant 0 : i32
    %c0_i32_1 = arith.constant 0 : i32
    return %c0_i32, %c0_i32_0 : i32, i32
  }
}

</mosaic_0001>

<llo_original>
// kernel: rnn_classifier_forward.1
$region0: #{rnn_classifier_forward.1}
  #allocation0 [shape = 'u32[]', space=smem, size = 0x4, offset = 0x4, fixed_abs, tag = 'smem constant byte address 0x4 - core index']
  #allocation1 [shape = 'u32[72,128]{1,0:T(1,128)}', space=vmem, size = 0x9000, scoped, tag = 'internal scratch']
  %s0 = inlined_call_operand.vmem [shape: f32[2,32], index: 0, kind: input, shape index: {}]
  %s1 = inlined_call_operand.hbm [shape: f32[152,1024], index: 1, kind: input, shape index: {}]
  %s2 = inlined_call_operand.hbm [shape: f32[2,128], index: 2, kind: output, shape index: {}]
  %s3 = sld [smem:[#allocation0]]
  $region22: #{rnn_classifier_forward.1} parent=0
    _
  %s5 = ssub.s32 1, %s3
  %s6 = scalar_select 0, %s5, %s3
  $region1: #{rnn_classifier_forward.1} parent=0
    #allocation2 [shape = 'u8[622592]{0}', space=vmem, size = 0x98000, scoped, tag = 'input window, operand 1, single buffered']
    #allocation3 [shape = 's32[1]{0}', space=sflag, size = 0x4, scoped, tag = 'scoped memory for rnn_classifier_forward.1']
    #allocation4 [shape = 's32[1]{0}', space=sflag, size = 0x4, scoped, tag = 'scoped memory for rnn_classifier_forward.1']
    #allocation5 [shape = 'u8[1024]{0}', space=vmem, size = 0x400, scoped, tag = 'output window, operand 0, single buffered']
    %7 = vsyncpa [#allocation3], 0
    %8 = vsyncpa [#allocation4], 0
    // Predicated region
    $region2: #{rnn_classifier_forward.1} parent=1 // pred_check
      _
    $region3: #{rnn_classifier_forward.1} parent=1 // pred_check_branch
      %10 = sbr.rel (0) target = $region5
    $region4: #{rnn_classifier_forward.1} parent=1 // pred_region
      _
    $region5: #{rnn_classifier_forward.1} parent=1 // pred_fallthru
      _
    // Predicated region
    $region6: #{rnn_classifier_forward.1} parent=1 // pred_check
      _
    $region7: #{rnn_classifier_forward.1} parent=1 // pred_check_branch
      %12 = sbr.rel (0) target = $region9
    $region8: #{rnn_classifier_forward.1} parent=1 // pred_region
      %14 = vsyncadd [#allocation3], 0
      %s15 = sshll.u32 %s1, 4
      %s16 = int_to_ptr.hbm [resolvable:$true] %s15
      %s17 = sshll.u32 [#allocation2], 4
      %s18 = int_to_ptr.vmem [resolvable:$true] %s17
      %23 = dma.hbm_to_vmem [thread:$0]  %s16, 19456, %s18, [#allocation3], 1024, 1024, 64
    $region9: #{rnn_classifier_forward.1} parent=1 // pred_fallthru
      _
    // Predicated region
    $region10: #{rnn_classifier_forward.1} parent=1 // pred_check
      _
    $region11: #{rnn_classifier_forward.1} parent=1 // pred_check_branch
      %25 = sbr.rel (0) target = $region13
    $region12: #{rnn_classifier_forward.1} parent=1 // pred_region
      %27 = dma.done [#allocation3], 19456
    $region13: #{rnn_classifier_forward.1} parent=1 // pred_fallthru
      _
    %v28 = vld [vmem:[%s0] sm:$0x3]
    %v29 = vld [vmem:[#allocation2] sm:$0xff]
    %v30 = vld [vmem:[#allocation2 + $0x8] sm:$0xff]
    %v31 = vld [vmem:[#allocation2 + $0x10] sm:$0xff]
    %v32 = vld [vmem:[#allocation2 + $0x18] sm:$0xff]
    %v33 = vld [vmem:[#allocation2 + $0x20] sm:$0xff]
    %v34 = vld [vmem:[#allocation2 + $0x28] sm:$0xff]
    %v35 = vld [vmem:[#allocation2 + $0x30] sm:$0xff]
    %v36 = vld [vmem:[#allocation2 + $0x38] sm:$0xff]
    %v37 = vld [vmem:[#allocation2 + $0x40] sm:$0xff]
    %v38 = vld [vmem:[#allocation2 + $0x48] sm:$0xff]
    %v39 = vld [vmem:[#allocation2 + $0x50] sm:$0xff]
    %v40 = vld [vmem:[#allocation2 + $0x58] sm:$0xff]
    %v41 = vld [vmem:[#allocation2 + $0x60] sm:$0xff]
    %v42 = vld [vmem:[#allocation2 + $0x68] sm:$0xff]
    %v43 = vld [vmem:[#allocation2 + $0x70] sm:$0xff]
    %v44 = vld [vmem:[#allocation2 + $0x78] sm:$0xff]
    %v45 = vld [vmem:[#allocation2 + $0x80] sm:$0xff]
    %v46 = vld [vmem:[#allocation2 + $0x88] sm:$0xff]
    %v47 = vld [vmem:[#allocation2 + $0x90] sm:$0xff]
    %v48 = vld [vmem:[#allocation2 + $0x98] sm:$0xff]
    %v49 = vld [vmem:[#allocation2 + $0xa0] sm:$0xff]
    %v50 = vld [vmem:[#allocation2 + $0xa8] sm:$0xff]
    %v51 = vld [vmem:[#allocation2 + $0xb0] sm:$0xff]
    %v52 = vld [vmem:[#allocation2 + $0xb8] sm:$0xff]
    %v53 = vld [vmem:[#allocation2 + $0xc0] sm:$0xff]
    %v54 = vld [vmem:[#allocation2 + $0xc8] sm:$0xff]
    %v55 = vld [vmem:[#allocation2 + $0xd0] sm:$0xff]
    %v56 = vld [vmem:[#allocation2 + $0xd8] sm:$0xff]
    %v57 = vld [vmem:[#allocation2 + $0xe0] sm:$0xff]
    %v58 = vld [vmem:[#allocation2 + $0xe8] sm:$0xff]
    %v59 = vld [vmem:[#allocation2 + $0xf0] sm:$0xff]
    %v60 = vld [vmem:[#allocation2 + $0xf8] sm:$0xff]
    %s61 = scalar_lea.vmem [#allocation2], 256
    %v62 = vld [vmem:[%s61] ss:$8 sm:$0xf]
    %v63 = vld [vmem:[%s61] ss:$8 sm:$0xf0]
    %v64 = vor.u32 %v62, %v63
    %v66 = vperm.slane %v64, 0
    %v67 = vperm.slane %v64, 1
    %v68 = vperm.slane %v64, 2
    %v69 = vperm.slane %v64, 3
    %v70 = vperm.slane %v64, 4
    %v71 = vperm.slane %v64, 5
    %v72 = vperm.slane %v64, 6
    %v73 = vperm.slane %v64, 7
    %vm82 = vcmask 261120
    %v84 = vsel %vm82, %v28, 0
    %86 = vmatpush.msra.mxu0 0.0
    %87 = vmatpush.msra.mxu0 0.0
    %88 = vmatpush.msra.mxu0 0.0
    %89 = vmatpush.msra.mxu0 0.0
    %90 = vmatpush.msra.mxu0 0.0
    %91 = vmatpush.msra.mxu0 0.0
    %92 = vmatpush.msra.mxu0 0.0
    %93 = vmatpush.msra.mxu0 0.0
    %94 = vmatpush.msra.mxu0 0.0
    %95 = vmatpush.msra.mxu0 0.0
    %96 = vmatpush.msra.mxu0 0.0
    %97 = vmatpush.msra.mxu0 0.0
    %98 = vmatpush.msra.mxu0 %v53
    %99 = vmatpush.msra.mxu0 %v45
    %100 = vmatpush.msra.mxu0 %v37
    %101 = vmatpush.msra.mxu0 %v29
    %102 = vmatmul.f32.gmra.mxu0 %v84
    %v103 = vpop.f32.mrf.mxu0
    %v104 = vadd.f32 %v66, %v103
    %105 = vdwg.mxu0
    %106 = vmatpush.msra.mxu0 0.0
    %107 = vmatpush.msra.mxu0 0.0
    %108 = vmatpush.msra.mxu0 0.0
    %109 = vmatpush.msra.mxu0 0.0
    %110 = vmatpush.msra.mxu0 0.0
    %111 = vmatpush.msra.mxu0 0.0
    %112 = vmatpush.msra.mxu0 0.0
    %113 = vmatpush.msra.mxu0 0.0
    %114 = vmatpush.msra.mxu0 0.0
    %115 = vmatpush.msra.mxu0 0.0
    %116 = vmatpush.msra.mxu0 0.0
    %117 = vmatpush.msra.mxu0 0.0
    %118 = vmatpush.msra.mxu0 %v54
    %119 = vmatpush.msra.mxu0 %v46
    %120 = vmatpush.msra.mxu0 %v38
    %121 = vmatpush.msra.mxu0 %v30
    %122 = vmatmul.f32.gmra.mxu0 %v84
    %v123 = vpop.f32.mrf.mxu0
    %v124 = vadd.f32 %v67, %v123
    %125 = vdwg.mxu0
    %126 = vmatpush.msra.mxu0 0.0
    %127 = vmatpush.msra.mxu0 0.0
    %128 = vmatpush.msra.mxu0 0.0
    %129 = vmatpush.msra.mxu0 0.0
    %130 = vmatpush.msra.mxu0 0.0
    %131 = vmatpush.msra.mxu0 0.0
    %132 = vmatpush.msra.mxu0 0.0
    %133 = vmatpush.msra.mxu0 0.0
    %134 = vmatpush.msra.mxu0 0.0
    %135 = vmatpush.msra.mxu0 0.0
    %136 = vmatpush.msra.mxu0 0.0
    %137 = vmatpush.msra.mxu0 0.0
    %138 = vmatpush.msra.mxu0 %v55
    %139 = vmatpush.msra.mxu0 %v47
    %140 = vmatpush.msra.mxu0 %v39
    %141 = vmatpush.msra.mxu0 %v31
    %142 = vmatmul.f32.gmra.mxu0 %v84
    %v143 = vpop.f32.mrf.mxu0
    %v144 = vadd.f32 %v68, %v143
    %145 = vdwg.mxu0
    %146 = vmatpush.msra.mxu0 0.0
    %147 = vmatpush.msra.mxu0 0.0
    %148 = vmatpush.msra.mxu0 0.0
    %149 = vmatpush.msra.mxu0 0.0
    %150 = vmatpush.msra.mxu0 0.0
    %151 = vmatpush.msra.mxu0 0.0
    %152 = vmatpush.msra.mxu0 0.0
    %153 = vmatpush.msra.mxu0 0.0
    %154 = vmatpush.msra.mxu0 0.0
    %155 = vmatpush.msra.mxu0 0.0
    %156 = vmatpush.msra.mxu0 0.0
    %157 = vmatpush.msra.mxu0 0.0
    %158 = vmatpush.msra.mxu0 %v56
    %159 = vmatpush.msra.mxu0 %v48
    %160 = vmatpush.msra.mxu0 %v40
    %161 = vmatpush.msra.mxu0 %v32
    %162 = vmatmul.f32.gmra.mxu0 %v84
    %v163 = vpop.f32.mrf.mxu0
    %v164 = vadd.f32 %v69, %v163
    %165 = vdwg.mxu0
    %166 = vmatpush.msra.mxu0 0.0
    %167 = vmatpush.msra.mxu0 0.0
    %168 = vmatpush.msra.mxu0 0.0
    %169 = vmatpush.msra.mxu0 0.0
    %170 = vmatpush.msra.mxu0 0.0
    %171 = vmatpush.msra.mxu0 0.0
    %172 = vmatpush.msra.mxu0 0.0
    %173 = vmatpush.msra.mxu0 0.0
    %174 = vmatpush.msra.mxu0 0.0
    %175 = vmatpush.msra.mxu0 0.0
    %176 = vmatpush.msra.mxu0 0.0
    %177 = vmatpush.msra.mxu0 0.0
    %178 = vmatpush.msra.mxu0 %v57
    %179 = vmatpush.msra.mxu0 %v49
    %180 = vmatpush.msra.mxu0 %v41
    %181 = vmatpush.msra.mxu0 %v33
    %182 = vmatmul.f32.gmra.mxu0 %v84
    %v183 = vpop.f32.mrf.mxu0
    %v184 = vadd.f32 %v70, %v183
    %185 = vdwg.mxu0
    %186 = vmatpush.msra.mxu0 0.0
    %187 = vmatpush.msra.mxu0 0.0
    %188 = vmatpush.msra.mxu0 0.0
    %189 = vmatpush.msra.mxu0 0.0
    %190 = vmatpush.msra.mxu0 0.0
    %191 = vmatpush.msra.mxu0 0.0
    %192 = vmatpush.msra.mxu0 0.0
    %193 = vmatpush.msra.mxu0 0.0
    %194 = vmatpush.msra.mxu0 0.0
    %195 = vmatpush.msra.mxu0 0.0
    %196 = vmatpush.msra.mxu0 0.0
    %197 = vmatpush.msra.mxu0 0.0
    %198 = vmatpush.msra.mxu0 %v58
    %199 = vmatpush.msra.mxu0 %v50
    %200 = vmatpush.msra.mxu0 %v42
    %201 = vmatpush.msra.mxu0 %v34
    %202 = vmatmul.f32.gmra.mxu0 %v84
    %v203 = vpop.f32.mrf.mxu0
    %v204 = vadd.f32 %v71, %v203
    %205 = vdwg.mxu0
    %206 = vmatpush.msra.mxu0 0.0
    %207 = vmatpush.msra.mxu0 0.0
    %208 = vmatpush.msra.mxu0 0.0
    %209 = vmatpush.msra.mxu0 0.0
    %210 = vmatpush.msra.mxu0 0.0
    %211 = vmatpush.msra.mxu0 0.0
    %212 = vmatpush.msra.mxu0 0.0
    %213 = vmatpush.msra.mxu0 0.0
    %214 = vmatpush.msra.mxu0 0.0
    %215 = vmatpush.msra.mxu0 0.0
    %216 = vmatpush.msra.mxu0 0.0
    %217 = vmatpush.msra.mxu0 0.0
    %218 = vmatpush.msra.mxu0 %v59
    %219 = vmatpush.msra.mxu0 %v51
    %220 = vmatpush.msra.mxu0 %v43
    %221 = vmatpush.msra.mxu0 %v35
    %222 = vmatmul.f32.gmra.mxu0 %v84
    %v223 = vpop.f32.mrf.mxu0
    %v224 = vadd.f32 %v72, %v223
    %225 = vdwg.mxu0
    %226 = vmatpush.msra.mxu0 0.0
    %227 = vmatpush.msra.mxu0 0.0
    %228 = vmatpush.msra.mxu0 0.0
    %229 = vmatpush.msra.mxu0 0.0
    %230 = vmatpush.msra.mxu0 0.0
    %231 = vmatpush.msra.mxu0 0.0
    %232 = vmatpush.msra.mxu0 0.0
    %233 = vmatpush.msra.mxu0 0.0
    %234 = vmatpush.msra.mxu0 0.0
    %235 = vmatpush.msra.mxu0 0.0
    %236 = vmatpush.msra.mxu0 0.0
    %237 = vmatpush.msra.mxu0 0.0
    %238 = vmatpush.msra.mxu0 %v60
    %239 = vmatpush.msra.mxu0 %v52
    %240 = vmatpush.msra.mxu0 %v44
    %241 = vmatpush.msra.mxu0 %v36
    %242 = vmatmul.f32.gmra.mxu0 %v84
    %v243 = vpop.f32.mrf.mxu0
    %v244 = vadd.f32 %v73, %v243
    %245 = vdwg.mxu0
    %v246 = vld [vmem:[#allocation2 + $0x140] sm:$0xff]
    %v247 = vld [vmem:[#allocation2 + $0x148] sm:$0xff]
    %v248 = vld [vmem:[#allocation2 + $0x150] sm:$0xff]
    %v249 = vld [vmem:[#allocation2 + $0x180] sm:$0xff]
    %v250 = vld [vmem:[#allocation2 + $0x188] sm:$0xff]
    %v251 = vld [vmem:[#allocation2 + $0x190] sm:$0xff]
    %v252 = vld [vmem:[#allocation2 + $0x1c0] sm:$0xff]
    %v253 = vld [vmem:[#allocation2 + $0x1c8] sm:$0xff]
    %v254 = vld [vmem:[#allocation2 + $0x1d0] sm:$0xff]
    %v255 = vld [vmem:[#allocation2 + $0x200] sm:$0xff]
    %v256 = vld [vmem:[#allocation2 + $0x208] sm:$0xff]
    %v257 = vld [vmem:[#allocation2 + $0x210] sm:$0xff]
    %v258 = vld [vmem:[#allocation2 + $0x240] sm:$0xff]
    %v259 = vld [vmem:[#allocation2 + $0x248] sm:$0xff]
    %v260 = vld [vmem:[#allocation2 + $0x250] sm:$0xff]
    %v261 = vld [vmem:[#allocation2 + $0x280] sm:$0xff]
    %v262 = vld [vmem:[#allocation2 + $0x288] sm:$0xff]
    %v263 = vld [vmem:[#allocation2 + $0x290] sm:$0xff]
    %v264 = vld [vmem:[#allocation2 + $0x2c0] sm:$0xff]
    %v265 = vld [vmem:[#allocation2 + $0x2c8] sm:$0xff]
    %v266 = vld [vmem:[#allocation2 + $0x2d0] sm:$0xff]
    %v267 = vld [vmem:[#allocation2 + $0x300] sm:$0xff]
    %v268 = vld [vmem:[#allocation2 + $0x308] sm:$0xff]
    %v269 = vld [vmem:[#allocation2 + $0x310] sm:$0xff]
    %v270 = vld [vmem:[#allocation2 + $0x340] ss:$0 sm:$0xff]
    %v271 = vadd.f32 %v104, 0.0
    %v272 = vxor.u32 %v271, 2147483648
    %v273 = vmul.f32 %v272, 1.442695
    %v274 = vpow.pop %v273
    %v275 = vadd.f32 %v274, 1.0
    %v276 = vrcp.pop %v275
    %v277 = vmul.f32 %v275, %v276
    %v278 = vsub.f32 1.0, %v277
    %v279 = vmul.f32 %v276, %v278
    %v280 = vadd.f32 %v276, %v279
    %vm281 = vweird.f32 %v275
    %vm282 = vweird.f32 %v276
    %vm283 = vmor %vm281, %vm282
    %v284 = vsel %vm283, %v276, %v280
    %v285 = vand.u32 2147483647, %v275
    %vm286 = vcmp.eq.f32.partialorder %v285, 8.507059e+37
    %v287 = vand.u32 %v275, 2147483648
    %v288 = vor.u32 1.1754944e-38, %v287
    %v289 = vsel %vm286, %v288, %v284
    %v290 = vmul.f32 1.0, %v289
    %v291 = vtanh.pop %v271
    %v292 = vmul.f32 %v290, 0.0
    %294 = vrot.lane.b32.xlu0 %v291, 32
    %v295 = vpop.permute.xlu0 %294
    %v297 = vmul.f32 %v290, %v295
    %299 = vrot.lane.b32.xlu0 %v297, 32
    %v300 = vpop.permute.xlu0 %299
    %v302 = vadd.f32 %v292, %v300
    %v303 = vtanh.pop %v302
    %305 = vrot.lane.b32.xlu0 %v303, 32
    %v306 = vpop.permute.xlu0 %305
    %v308 = vmul.f32 %v290, %v306
    %310 = vrot.lane.b32.xlu0 %v308, 64
    %v311 = vpop.permute.xlu0 %310
    %v313 = vsel %vm82, %v311, 0.0
    %vm314 = vcmask 523264
    %v316 = vsel %vm314, %v313, 0
    %318 = vmatpush.msra.mxu0 0.0
    %319 = vmatpush.msra.mxu0 0.0
    %320 = vmatpush.msra.mxu0 0.0
    %321 = vmatpush.msra.mxu0 0.0
    %322 = vmatpush.msra.mxu0 0.0
    %323 = vmatpush.msra.mxu0 0.0
    %324 = vmatpush.msra.mxu0 0.0
    %325 = vmatpush.msra.mxu0 0.0
    %326 = vmatpush.msra.mxu0 %v267
    %327 = vmatpush.msra.mxu0 %v264
    %328 = vmatpush.msra.mxu0 %v261
    %329 = vmatpush.msra.mxu0 %v258
    %330 = vmatpush.msra.mxu0 %v255
    %331 = vmatpush.msra.mxu0 %v252
    %332 = vmatpush.msra.mxu0 %v249
    %333 = vmatpush.msra.mxu0 %v246
    %334 = vmatmul.f32.gmra.mxu0 %v316
    %v335 = vpop.f32.mrf.mxu0
    %v336 = vadd.f32 0.0, %v335
    %337 = vdwg.mxu0
    %338 = vmatpush.msra.mxu0 0.0
    %339 = vmatpush.msra.mxu0 0.0
    %340 = vmatpush.msra.mxu0 0.0
    %341 = vmatpush.msra.mxu0 0.0
    %342 = vmatpush.msra.mxu0 0.0
    %343 = vmatpush.msra.mxu0 0.0
    %344 = vmatpush.msra.mxu0 0.0
    %345 = vmatpush.msra.mxu0 0.0
    %346 = vmatpush.msra.mxu0 %v268
    %347 = vmatpush.msra.mxu0 %v265
    %348 = vmatpush.msra.mxu0 %v262
    %349 = vmatpush.msra.mxu0 %v259
    %350 = vmatpush.msra.mxu0 %v256
    %351 = vmatpush.msra.mxu0 %v253
    %352 = vmatpush.msra.mxu0 %v250
    %353 = vmatpush.msra.mxu0 %v247
    %354 = vmatmul.f32.gmra.mxu0 %v316
    %v355 = vpop.f32.mrf.mxu0
    %v356 = vadd.f32 0.0, %v355
    %357 = vdwg.mxu0
    %358 = vmatpush.msra.mxu0 0.0
    %359 = vmatpush.msra.mxu0 0.0
    %360 = vmatpush.msra.mxu0 0.0
    %361 = vmatpush.msra.mxu0 0.0
    %362 = vmatpush.msra.mxu0 0.0
    %363 = vmatpush.msra.mxu0 0.0
    %364 = vmatpush.msra.mxu0 0.0
    %365 = vmatpush.msra.mxu0 0.0
    %366 = vmatpush.msra.mxu0 %v269
    %367 = vmatpush.msra.mxu0 %v266
    %368 = vmatpush.msra.mxu0 %v263
    %369 = vmatpush.msra.mxu0 %v260
    %370 = vmatpush.msra.mxu0 %v257
    %371 = vmatpush.msra.mxu0 %v254
    %372 = vmatpush.msra.mxu0 %v251
    %373 = vmatpush.msra.mxu0 %v248
    %374 = vmatmul.f32.gmra.mxu0 %v316
    %v375 = vpop.f32.mrf.mxu0
    %v376 = vadd.f32 0.0, %v375
    %377 = vdwg.mxu0
    %v378 = vadd.f32 %v336, %v376
    %v379 = vadd.f32 %v378, %v270
    %v380 = vxor.u32 %v379, 2147483648
    %v381 = vmul.f32 %v380, 1.442695
    %v382 = vpow.pop %v381
    %v383 = vadd.f32 %v382, 1.0
    %v384 = vrcp.pop %v383
    %v385 = vmul.f32 %v383, %v384
    %v386 = vsub.f32 1.0, %v385
    %v387 = vmul.f32 %v384, %v386
    %v388 = vadd.f32 %v384, %v387
    %vm389 = vweird.f32 %v383
    %vm390 = vweird.f32 %v384
    %vm391 = vmor %vm389, %vm390
    %v392 = vsel %vm391, %v384, %v388
    %v393 = vand.u32 2147483647, %v383
    %vm394 = vcmp.eq.f32.partialorder %v393, 8.507059e+37
    %v395 = vand.u32 %v383, 2147483648
    %v396 = vor.u32 1.1754944e-38, %v395
    %v397 = vsel %vm394, %v396, %v392
    %v398 = vmul.f32 1.0, %v397
    %v399 = vtanh.pop %v379
    %v400 = vmul.f32 %v398, 0.0
    %402 = vrot.lane.b32.xlu0 %v399, 32
    %v403 = vpop.permute.xlu0 %402
    %v405 = vmul.f32 %v398, %v403
    %407 = vrot.lane.b32.xlu0 %v405, 32
    %v408 = vpop.permute.xlu0 %407
    %v410 = vadd.f32 %v400, %v408
    %v411 = vtanh.pop %v410
    %413 = vrot.lane.b32.xlu0 %v411, 32
    %v414 = vpop.permute.xlu0 %413
    %v416 = vmul.f32 %v398, %v414
    %v417 = vtanh.pop %v416
    %v418 = vadd.f32 %v124, %v356
    %v419 = vxor.u32 %v418, 2147483648
    %v420 = vmul.f32 %v419, 1.442695
    %v421 = vpow.pop %v420
    %v422 = vadd.f32 %v421, 1.0
    %v423 = vrcp.pop %v422
    %v424 = vmul.f32 %v422, %v423
    %v425 = vsub.f32 1.0, %v424
    %v426 = vmul.f32 %v423, %v425
    %v427 = vadd.f32 %v423, %v426
    %vm428 = vweird.f32 %v422
    %vm429 = vweird.f32 %v423
    %vm430 = vmor %vm428, %vm429
    %v431 = vsel %vm430, %v423, %v427
    %v432 = vand.u32 2147483647, %v422
    %vm433 = vcmp.eq.f32.partialorder %v432, 8.507059e+37
    %v434 = vand.u32 %v422, 2147483648
    %v435 = vor.u32 1.1754944e-38, %v434
    %v436 = vsel %vm433, %v435, %v431
    %v437 = vmul.f32 1.0, %v436
    %v438 = vtanh.pop %v418
    %v439 = vmul.f32 %v437, %v302
    %441 = vrot.lane.b32.xlu0 %v438, 32
    %v442 = vpop.permute.xlu0 %441
    %v444 = vmul.f32 %v437, %v442
    %446 = vrot.lane.b32.xlu0 %v444, 32
    %v447 = vpop.permute.xlu0 %446
    %v449 = vadd.f32 %v439, %v447
    %v450 = vtanh.pop %v449
    %452 = vrot.lane.b32.xlu0 %v450, 32
    %v453 = vpop.permute.xlu0 %452
    %v455 = vmul.f32 %v437, %v453
    %457 = vrot.lane.b32.xlu0 %v455, 64
    %v458 = vpop.permute.xlu0 %457
    %461 = vrot.lane.b32.xlu0 %v416, 96
    %v462 = vpop.permute.xlu0 %461
    %v464 = vsel %vm82, %v458, %v462
    %v466 = vsel %vm314, %v464, 0
    %468 = vmatpush.msra.mxu0 0.0
    %469 = vmatpush.msra.mxu0 0.0
    %470 = vmatpush.msra.mxu0 0.0
    %471 = vmatpush.msra.mxu0 0.0
    %472 = vmatpush.msra.mxu0 0.0
    %473 = vmatpush.msra.mxu0 0.0
    %474 = vmatpush.msra.mxu0 0.0
    %475 = vmatpush.msra.mxu0 0.0
    %476 = vmatpush.msra.mxu0 %v267
    %477 = vmatpush.msra.mxu0 %v264
    %478 = vmatpush.msra.mxu0 %v261
    %479 = vmatpush.msra.mxu0 %v258
    %480 = vmatpush.msra.mxu0 %v255
    %481 = vmatpush.msra.mxu0 %v252
    %482 = vmatpush.msra.mxu0 %v249
    %483 = vmatpush.msra.mxu0 %v246
    %484 = vmatmul.f32.gmra.mxu0 %v466
    %v485 = vpop.f32.mrf.mxu0
    %v486 = vadd.f32 0.0, %v485
    %487 = vdwg.mxu0
    %488 = vmatpush.msra.mxu0 0.0
    %489 = vmatpush.msra.mxu0 0.0
    %490 = vmatpush.msra.mxu0 0.0
    %491 = vmatpush.msra.mxu0 0.0
    %492 = vmatpush.msra.mxu0 0.0
    %493 = vmatpush.msra.mxu0 0.0
    %494 = vmatpush.msra.mxu0 0.0
    %495 = vmatpush.msra.mxu0 0.0
    %496 = vmatpush.msra.mxu0 %v268
    %497 = vmatpush.msra.mxu0 %v265
    %498 = vmatpush.msra.mxu0 %v262
    %499 = vmatpush.msra.mxu0 %v259
    %500 = vmatpush.msra.mxu0 %v256
    %501 = vmatpush.msra.mxu0 %v253
    %502 = vmatpush.msra.mxu0 %v250
    %503 = vmatpush.msra.mxu0 %v247
    %504 = vmatmul.f32.gmra.mxu0 %v466
    %v505 = vpop.f32.mrf.mxu0
    %v506 = vadd.f32 0.0, %v505
    %507 = vdwg.mxu0
    %508 = vmatpush.msra.mxu0 0.0
    %509 = vmatpush.msra.mxu0 0.0
    %510 = vmatpush.msra.mxu0 0.0
    %511 = vmatpush.msra.mxu0 0.0
    %512 = vmatpush.msra.mxu0 0.0
    %513 = vmatpush.msra.mxu0 0.0
    %514 = vmatpush.msra.mxu0 0.0
    %515 = vmatpush.msra.mxu0 0.0
    %516 = vmatpush.msra.mxu0 %v269
    %517 = vmatpush.msra.mxu0 %v266
    %518 = vmatpush.msra.mxu0 %v263
    %519 = vmatpush.msra.mxu0 %v260
    %520 = vmatpush.msra.mxu0 %v257
    %521 = vmatpush.msra.mxu0 %v254
    %522 = vmatpush.msra.mxu0 %v251
    %523 = vmatpush.msra.mxu0 %v248
    %524 = vmatmul.f32.gmra.mxu0 %v466
    %v525 = vpop.f32.mrf.mxu0
    %v526 = vadd.f32 0.0, %v525
    %527 = vdwg.mxu0
    %v528 = vadd.f32 %v486, %v526
    %v529 = vadd.f32 %v528, %v270
    %v530 = vxor.u32 %v529, 2147483648
    %v531 = vmul.f32 %v530, 1.442695
    %v532 = vpow.pop %v531
    %v533 = vadd.f32 %v532, 1.0
    %v534 = vrcp.pop %v533
    %v535 = vmul.f32 %v533, %v534
    %v536 = vsub.f32 1.0, %v535
    %v537 = vmul.f32 %v534, %v536
    %v538 = vadd.f32 %v534, %v537
    %vm539 = vweird.f32 %v533
    %vm540 = vweird.f32 %v534
    %vm541 = vmor %vm539, %vm540
    %v542 = vsel %vm541, %v534, %v538
    %v543 = vand.u32 2147483647, %v533
    %vm544 = vcmp.eq.f32.partialorder %v543, 8.507059e+37
    %v545 = vand.u32 %v533, 2147483648
    %v546 = vor.u32 1.1754944e-38, %v545
    %v547 = vsel %vm544, %v546, %v542
    %v548 = vmul.f32 1.0, %v547
    %v549 = vtanh.pop %v529
    %v550 = vmul.f32 %v548, %v410
    %552 = vrot.lane.b32.xlu0 %v549, 32
    %v553 = vpop.permute.xlu0 %552
    %v555 = vmul.f32 %v548, %v553
    %557 = vrot.lane.b32.xlu0 %v555, 32
    %v558 = vpop.permute.xlu0 %557
    %v560 = vadd.f32 %v550, %v558
    %v561 = vtanh.pop %v560
    %563 = vrot.lane.b32.xlu0 %v561, 32
    %v564 = vpop.permute.xlu0 %563
    %v566 = vmul.f32 %v548, %v564
    %v567 = vtanh.pop %v566
    %v568 = vmax.f32 %v417, %v567
    %v569 = vadd.f32 %v144, %v506
    %v570 = vxor.u32 %v569, 2147483648
    %v571 = vmul.f32 %v570, 1.442695
    %v572 = vpow.pop %v571
    %v573 = vadd.f32 %v572, 1.0
    %v574 = vrcp.pop %v573
    %v575 = vmul.f32 %v573, %v574
    %v576 = vsub.f32 1.0, %v575
    %v577 = vmul.f32 %v574, %v576
    %v578 = vadd.f32 %v574, %v577
    %vm579 = vweird.f32 %v573
    %vm580 = vweird.f32 %v574
    %vm581 = vmor %vm579, %vm580
    %v582 = vsel %vm581, %v574, %v578
    %v583 = vand.u32 2147483647, %v573
    %vm584 = vcmp.eq.f32.partialorder %v583, 8.507059e+37
    %v585 = vand.u32 %v573, 2147483648
    %v586 = vor.u32 1.1754944e-38, %v585
    %v587 = vsel %vm584, %v586, %v582
    %v588 = vmul.f32 1.0, %v587
    %v589 = vtanh.pop %v569
    %v590 = vmul.f32 %v588, %v449
    %592 = vrot.lane.b32.xlu0 %v589, 32
    %v593 = vpop.permute.xlu0 %592
    %v595 = vmul.f32 %v588, %v593
    %597 = vrot.lane.b32.xlu0 %v595, 32
    %v598 = vpop.permute.xlu0 %597
    %v600 = vadd.f32 %v590, %v598
    %v601 = vtanh.pop %v600
    %603 = vrot.lane.b32.xlu0 %v601, 32
    %v604 = vpop.permute.xlu0 %603
    %v606 = vmul.f32 %v588, %v604
    %608 = vrot.lane.b32.xlu0 %v606, 64
    %v609 = vpop.permute.xlu0 %608
    %612 = vrot.lane.b32.xlu0 %v566, 96
    %v613 = vpop.permute.xlu0 %612
    %v615 = vsel %vm82, %v609, %v613
    %v617 = vsel %vm314, %v615, 0
    %619 = vmatpush.msra.mxu0 0.0
    %620 = vmatpush.msra.mxu0 0.0
    %621 = vmatpush.msra.mxu0 0.0
    %622 = vmatpush.msra.mxu0 0.0
    %623 = vmatpush.msra.mxu0 0.0
    %624 = vmatpush.msra.mxu0 0.0
    %625 = vmatpush.msra.mxu0 0.0
    %626 = vmatpush.msra.mxu0 0.0
    %627 = vmatpush.msra.mxu0 %v267
    %628 = vmatpush.msra.mxu0 %v264
    %629 = vmatpush.msra.mxu0 %v261
    %630 = vmatpush.msra.mxu0 %v258
    %631 = vmatpush.msra.mxu0 %v255
    %632 = vmatpush.msra.mxu0 %v252
    %633 = vmatpush.msra.mxu0 %v249
    %634 = vmatpush.msra.mxu0 %v246
    %635 = vmatmul.f32.gmra.mxu0 %v617
    %v636 = vpop.f32.mrf.mxu0
    %v637 = vadd.f32 0.0, %v636
    %638 = vdwg.mxu0
    %639 = vmatpush.msra.mxu0 0.0
    %640 = vmatpush.msra.mxu0 0.0
    %641 = vmatpush.msra.mxu0 0.0
    %642 = vmatpush.msra.mxu0 0.0
    %643 = vmatpush.msra.mxu0 0.0
    %644 = vmatpush.msra.mxu0 0.0
    %645 = vmatpush.msra.mxu0 0.0
    %646 = vmatpush.msra.mxu0 0.0
    %647 = vmatpush.msra.mxu0 %v268
    %648 = vmatpush.msra.mxu0 %v265
    %649 = vmatpush.msra.mxu0 %v262
    %650 = vmatpush.msra.mxu0 %v259
    %651 = vmatpush.msra.mxu0 %v256
    %652 = vmatpush.msra.mxu0 %v253
    %653 = vmatpush.msra.mxu0 %v250
    %654 = vmatpush.msra.mxu0 %v247
    %655 = vmatmul.f32.gmra.mxu0 %v617
    %v656 = vpop.f32.mrf.mxu0
    %v657 = vadd.f32 0.0, %v656
    %658 = vdwg.mxu0
    %659 = vmatpush.msra.mxu0 0.0
    %660 = vmatpush.msra.mxu0 0.0
    %661 = vmatpush.msra.mxu0 0.0
    %662 = vmatpush.msra.mxu0 0.0
    %663 = vmatpush.msra.mxu0 0.0
    %664 = vmatpush.msra.mxu0 0.0
    %665 = vmatpush.msra.mxu0 0.0
    %666 = vmatpush.msra.mxu0 0.0
    %667 = vmatpush.msra.mxu0 %v269
    %668 = vmatpush.msra.mxu0 %v266
    %669 = vmatpush.msra.mxu0 %v263
    %670 = vmatpush.msra.mxu0 %v260
    %671 = vmatpush.msra.mxu0 %v257
    %672 = vmatpush.msra.mxu0 %v254
    %673 = vmatpush.msra.mxu0 %v251
    %674 = vmatpush.msra.mxu0 %v248
    %675 = vmatmul.f32.gmra.mxu0 %v617
    %v676 = vpop.f32.mrf.mxu0
    %v677 = vadd.f32 0.0, %v676
    %678 = vdwg.mxu0
    %v679 = vadd.f32 %v637, %v677
    %v680 = vadd.f32 %v679, %v270
    %v681 = vxor.u32 %v680, 2147483648
    %v682 = vmul.f32 %v681, 1.442695
    %v683 = vpow.pop %v682
    %v684 = vadd.f32 %v683, 1.0
    %v685 = vrcp.pop %v684
    %v686 = vmul.f32 %v684, %v685
    %v687 = vsub.f32 1.0, %v686
    %v688 = vmul.f32 %v685, %v687
    %v689 = vadd.f32 %v685, %v688
    %vm690 = vweird.f32 %v684
    %vm691 = vweird.f32 %v685
    %vm692 = vmor %vm690, %vm691
    %v693 = vsel %vm692, %v685, %v689
    %v694 = vand.u32 2147483647, %v684
    %vm695 = vcmp.eq.f32.partialorder %v694, 8.507059e+37
    %v696 = vand.u32 %v684, 2147483648
    %v697 = vor.u32 1.1754944e-38, %v696
    %v698 = vsel %vm695, %v697, %v693
    %v699 = vmul.f32 1.0, %v698
    %v700 = vtanh.pop %v680
    %v701 = vmul.f32 %v699, %v560
    %703 = vrot.lane.b32.xlu0 %v700, 32
    %v704 = vpop.permute.xlu0 %703
    %v706 = vmul.f32 %v699, %v704
    %708 = vrot.lane.b32.xlu0 %v706, 32
    %v709 = vpop.permute.xlu0 %708
    %v711 = vadd.f32 %v701, %v709
    %v712 = vtanh.pop %v711
    %714 = vrot.lane.b32.xlu0 %v712, 32
    %v715 = vpop.permute.xlu0 %714
    %v717 = vmul.f32 %v699, %v715
    %v718 = vtanh.pop %v717
    %v719 = vmax.f32 %v568, %v718
    %v720 = vadd.f32 %v164, %v657
    %v721 = vxor.u32 %v720, 2147483648
    %v722 = vmul.f32 %v721, 1.442695
    %v723 = vpow.pop %v722
    %v724 = vadd.f32 %v723, 1.0
    %v725 = vrcp.pop %v724
    %v726 = vmul.f32 %v724, %v725
    %v727 = vsub.f32 1.0, %v726
    %v728 = vmul.f32 %v725, %v727
    %v729 = vadd.f32 %v725, %v728
    %vm730 = vweird.f32 %v724
    %vm731 = vweird.f32 %v725
    %vm732 = vmor %vm730, %vm731
    %v733 = vsel %vm732, %v725, %v729
    %v734 = vand.u32 2147483647, %v724
    %vm735 = vcmp.eq.f32.partialorder %v734, 8.507059e+37
    %v736 = vand.u32 %v724, 2147483648
    %v737 = vor.u32 1.1754944e-38, %v736
    %v738 = vsel %vm735, %v737, %v733
    %v739 = vmul.f32 1.0, %v738
    %v740 = vtanh.pop %v720
    %v741 = vmul.f32 %v739, %v600
    %743 = vrot.lane.b32.xlu0 %v740, 32
    %v744 = vpop.permute.xlu0 %743
    %v746 = vmul.f32 %v739, %v744
    %748 = vrot.lane.b32.xlu0 %v746, 32
    %v749 = vpop.permute.xlu0 %748
    %v751 = vadd.f32 %v741, %v749
    %v752 = vtanh.pop %v751
    %754 = vrot.lane.b32.xlu0 %v752, 32
    %v755 = vpop.permute.xlu0 %754
    %v757 = vmul.f32 %v739, %v755
    %759 = vrot.lane.b32.xlu0 %v757, 64
    %v760 = vpop.permute.xlu0 %759
    %763 = vrot.lane.b32.xlu0 %v717, 96
    %v764 = vpop.permute.xlu0 %763
    %v766 = vsel %vm82, %v760, %v764
    %v768 = vsel %vm314, %v766, 0
    %770 = vmatpush.msra.mxu0 0.0
    %771 = vmatpush.msra.mxu0 0.0
    %772 = vmatpush.msra.mxu0 0.0
    %773 = vmatpush.msra.mxu0 0.0
    %774 = vmatpush.msra.mxu0 0.0
    %775 = vmatpush.msra.mxu0 0.0
    %776 = vmatpush.msra.mxu0 0.0
    %777 = vmatpush.msra.mxu0 0.0
    %778 = vmatpush.msra.mxu0 %v267
    %779 = vmatpush.msra.mxu0 %v264
    %780 = vmatpush.msra.mxu0 %v261
    %781 = vmatpush.msra.mxu0 %v258
    %782 = vmatpush.msra.mxu0 %v255
    %783 = vmatpush.msra.mxu0 %v252
    %784 = vmatpush.msra.mxu0 %v249
    %785 = vmatpush.msra.mxu0 %v246
    %786 = vmatmul.f32.gmra.mxu0 %v768
    %v787 = vpop.f32.mrf.mxu0
    %v788 = vadd.f32 0.0, %v787
    %789 = vdwg.mxu0
    %790 = vmatpush.msra.mxu0 0.0
    %791 = vmatpush.msra.mxu0 0.0
    %792 = vmatpush.msra.mxu0 0.0
    %793 = vmatpush.msra.mxu0 0.0
    %794 = vmatpush.msra.mxu0 0.0
    %795 = vmatpush.msra.mxu0 0.0
    %796 = vmatpush.msra.mxu0 0.0
    %797 = vmatpush.msra.mxu0 0.0
    %798 = vmatpush.msra.mxu0 %v268
    %799 = vmatpush.msra.mxu0 %v265
    %800 = vmatpush.msra.mxu0 %v262
    %801 = vmatpush.msra.mxu0 %v259
    %802 = vmatpush.msra.mxu0 %v256
    %803 = vmatpush.msra.mxu0 %v253
    %804 = vmatpush.msra.mxu0 %v250
    %805 = vmatpush.msra.mxu0 %v247
    %806 = vmatmul.f32.gmra.mxu0 %v768
    %v807 = vpop.f32.mrf.mxu0
    %v808 = vadd.f32 0.0, %v807
    %809 = vdwg.mxu0
    %810 = vmatpush.msra.mxu0 0.0
    %811 = vmatpush.msra.mxu0 0.0
    %812 = vmatpush.msra.mxu0 0.0
    %813 = vmatpush.msra.mxu0 0.0
    %814 = vmatpush.msra.mxu0 0.0
    %815 = vmatpush.msra.mxu0 0.0
    %816 = vmatpush.msra.mxu0 0.0
    %817 = vmatpush.msra.mxu0 0.0
    %818 = vmatpush.msra.mxu0 %v269
    %819 = vmatpush.msra.mxu0 %v266
    %820 = vmatpush.msra.mxu0 %v263
    %821 = vmatpush.msra.mxu0 %v260
    %822 = vmatpush.msra.mxu0 %v257
    %823 = vmatpush.msra.mxu0 %v254
    %824 = vmatpush.msra.mxu0 %v251
    %825 = vmatpush.msra.mxu0 %v248
    %826 = vmatmul.f32.gmra.mxu0 %v768
    %v827 = vpop.f32.mrf.mxu0
    %v828 = vadd.f32 0.0, %v827
    %829 = vdwg.mxu0
    %v830 = vadd.f32 %v788, %v828
    %v831 = vadd.f32 %v830, %v270
    %v832 = vxor.u32 %v831, 2147483648
    %v833 = vmul.f32 %v832, 1.442695
    %v834 = vpow.pop %v833
    %v835 = vadd.f32 %v834, 1.0
    %v836 = vrcp.pop %v835
    %v837 = vmul.f32 %v835, %v836
    %v838 = vsub.f32 1.0, %v837
    %v839 = vmul.f32 %v836, %v838
    %v840 = vadd.f32 %v836, %v839
    %vm841 = vweird.f32 %v835
    %vm842 = vweird.f32 %v836
    %vm843 = vmor %vm841, %vm842
    %v844 = vsel %vm843, %v836, %v840
    %v845 = vand.u32 2147483647, %v835
    %vm846 = vcmp.eq.f32.partialorder %v845, 8.507059e+37
    %v847 = vand.u32 %v835, 2147483648
    %v848 = vor.u32 1.1754944e-38, %v847
    %v849 = vsel %vm846, %v848, %v844
    %v850 = vmul.f32 1.0, %v849
    %v851 = vtanh.pop %v831
    %v852 = vmul.f32 %v850, %v711
    %854 = vrot.lane.b32.xlu0 %v851, 32
    %v855 = vpop.permute.xlu0 %854
    %v857 = vmul.f32 %v850, %v855
    %859 = vrot.lane.b32.xlu0 %v857, 32
    %v860 = vpop.permute.xlu0 %859
    %v862 = vadd.f32 %v852, %v860
    %v863 = vtanh.pop %v862
    %865 = vrot.lane.b32.xlu0 %v863, 32
    %v866 = vpop.permute.xlu0 %865
    %v868 = vmul.f32 %v850, %v866
    %v869 = vtanh.pop %v868
    %v870 = vmax.f32 %v719, %v869
    %v871 = vadd.f32 %v184, %v808
    %v872 = vxor.u32 %v871, 2147483648
    %v873 = vmul.f32 %v872, 1.442695
    %v874 = vpow.pop %v873
    %v875 = vadd.f32 %v874, 1.0
    %v876 = vrcp.pop %v875
    %v877 = vmul.f32 %v875, %v876
    %v878 = vsub.f32 1.0, %v877
    %v879 = vmul.f32 %v876, %v878
    %v880 = vadd.f32 %v876, %v879
    %vm881 = vweird.f32 %v875
    %vm882 = vweird.f32 %v876
    %vm883 = vmor %vm881, %vm882
    %v884 = vsel %vm883, %v876, %v880
    %v885 = vand.u32 2147483647, %v875
    %vm886 = vcmp.eq.f32.partialorder %v885, 8.507059e+37
    %v887 = vand.u32 %v875, 2147483648
    %v888 = vor.u32 1.1754944e-38, %v887
    %v889 = vsel %vm886, %v888, %v884
    %v890 = vmul.f32 1.0, %v889
    %v891 = vtanh.pop %v871
    %v892 = vmul.f32 %v890, %v751
    %894 = vrot.lane.b32.xlu0 %v891, 32
    %v895 = vpop.permute.xlu0 %894
    %v897 = vmul.f32 %v890, %v895
    %899 = vrot.lane.b32.xlu0 %v897, 32
    %v900 = vpop.permute.xlu0 %899
    %v902 = vadd.f32 %v892, %v900
    %v903 = vtanh.pop %v902
    %905 = vrot.lane.b32.xlu0 %v903, 32
    %v906 = vpop.permute.xlu0 %905
    %v908 = vmul.f32 %v890, %v906
    %910 = vrot.lane.b32.xlu0 %v908, 64
    %v911 = vpop.permute.xlu0 %910
    %914 = vrot.lane.b32.xlu0 %v868, 96
    %v915 = vpop.permute.xlu0 %914
    %v917 = vsel %vm82, %v911, %v915
    %v919 = vsel %vm314, %v917, 0
    %921 = vmatpush.msra.mxu0 0.0
    %922 = vmatpush.msra.mxu0 0.0
    %923 = vmatpush.msra.mxu0 0.0
    %924 = vmatpush.msra.mxu0 0.0
    %925 = vmatpush.msra.mxu0 0.0
    %926 = vmatpush.msra.mxu0 0.0
    %927 = vmatpush.msra.mxu0 0.0
    %928 = vmatpush.msra.mxu0 0.0
    %929 = vmatpush.msra.mxu0 %v267
    %930 = vmatpush.msra.mxu0 %v264
    %931 = vmatpush.msra.mxu0 %v261
    %932 = vmatpush.msra.mxu0 %v258
    %933 = vmatpush.msra.mxu0 %v255
    %934 = vmatpush.msra.mxu0 %v252
    %935 = vmatpush.msra.mxu0 %v249
    %936 = vmatpush.msra.mxu0 %v246
    %937 = vmatmul.f32.gmra.mxu0 %v919
    %v938 = vpop.f32.mrf.mxu0
    %v939 = vadd.f32 0.0, %v938
    %940 = vdwg.mxu0
    %941 = vmatpush.msra.mxu0 0.0
    %942 = vmatpush.msra.mxu0 0.0
    %943 = vmatpush.msra.mxu0 0.0
    %944 = vmatpush.msra.mxu0 0.0
    %945 = vmatpush.msra.mxu0 0.0
    %946 = vmatpush.msra.mxu0 0.0
    %947 = vmatpush.msra.mxu0 0.0
    %948 = vmatpush.msra.mxu0 0.0
    %949 = vmatpush.msra.mxu0 %v268
    %950 = vmatpush.msra.mxu0 %v265
    %951 = vmatpush.msra.mxu0 %v262
    %952 = vmatpush.msra.mxu0 %v259
    %953 = vmatpush.msra.mxu0 %v256
    %954 = vmatpush.msra.mxu0 %v253
    %955 = vmatpush.msra.mxu0 %v250
    %956 = vmatpush.msra.mxu0 %v247
    %957 = vmatmul.f32.gmra.mxu0 %v919
    %v958 = vpop.f32.mrf.mxu0
    %v959 = vadd.f32 0.0, %v958
    %960 = vdwg.mxu0
    %961 = vmatpush.msra.mxu0 0.0
    %962 = vmatpush.msra.mxu0 0.0
    %963 = vmatpush.msra.mxu0 0.0
    %964 = vmatpush.msra.mxu0 0.0
    %965 = vmatpush.msra.mxu0 0.0
    %966 = vmatpush.msra.mxu0 0.0
    %967 = vmatpush.msra.mxu0 0.0
    %968 = vmatpush.msra.mxu0 0.0
    %969 = vmatpush.msra.mxu0 %v269
    %970 = vmatpush.msra.mxu0 %v266
    %971 = vmatpush.msra.mxu0 %v263
    %972 = vmatpush.msra.mxu0 %v260
    %973 = vmatpush.msra.mxu0 %v257
    %974 = vmatpush.msra.mxu0 %v254
    %975 = vmatpush.msra.mxu0 %v251
    %976 = vmatpush.msra.mxu0 %v248
    %977 = vmatmul.f32.gmra.mxu0 %v919
    %v978 = vpop.f32.mrf.mxu0
    %v979 = vadd.f32 0.0, %v978
    %980 = vdwg.mxu0
    %v981 = vadd.f32 %v939, %v979
    %v982 = vadd.f32 %v981, %v270
    %v983 = vxor.u32 %v982, 2147483648
    %v984 = vmul.f32 %v983, 1.442695
    %v985 = vpow.pop %v984
    %v986 = vadd.f32 %v985, 1.0
    %v987 = vrcp.pop %v986
    %v988 = vmul.f32 %v986, %v987
    %v989 = vsub.f32 1.0, %v988
    %v990 = vmul.f32 %v987, %v989
    %v991 = vadd.f32 %v987, %v990
    %vm992 = vweird.f32 %v986
    %vm993 = vweird.f32 %v987
    %vm994 = vmor %vm992, %vm993
    %v995 = vsel %vm994, %v987, %v991
    %v996 = vand.u32 2147483647, %v986
    %vm997 = vcmp.eq.f32.partialorder %v996, 8.507059e+37
    %v998 = vand.u32 %v986, 2147483648
    %v999 = vor.u32 1.1754944e-38, %v998
    %v1000 = vsel %vm997, %v999, %v995
    %v1001 = vmul.f32 1.0, %v1000
    %v1002 = vtanh.pop %v982
    %v1003 = vmul.f32 %v1001, %v862
    %1005 = vrot.lane.b32.xlu0 %v1002, 32
    %v1006 = vpop.permute.xlu0 %1005
    %v1008 = vmul.f32 %v1001, %v1006
    %1010 = vrot.lane.b32.xlu0 %v1008, 32
    %v1011 = vpop.permute.xlu0 %1010
    %v1013 = vadd.f32 %v1003, %v1011
    %v1014 = vtanh.pop %v1013
    %1016 = vrot.lane.b32.xlu0 %v1014, 32
    %v1017 = vpop.permute.xlu0 %1016
    %v1019 = vmul.f32 %v1001, %v1017
    %v1020 = vtanh.pop %v1019
    %v1021 = vmax.f32 %v870, %v1020
    %v1022 = vadd.f32 %v204, %v959
    %v1023 = vxor.u32 %v1022, 2147483648
    %v1024 = vmul.f32 %v1023, 1.442695
    %v1025 = vpow.pop %v1024
    %v1026 = vadd.f32 %v1025, 1.0
    %v1027 = vrcp.pop %v1026
    %v1028 = vmul.f32 %v1026, %v1027
    %v1029 = vsub.f32 1.0, %v1028
    %v1030 = vmul.f32 %v1027, %v1029
    %v1031 = vadd.f32 %v1027, %v1030
    %vm1032 = vweird.f32 %v1026
    %vm1033 = vweird.f32 %v1027
    %vm1034 = vmor %vm1032, %vm1033
    %v1035 = vsel %vm1034, %v1027, %v1031
    %v1036 = vand.u32 2147483647, %v1026
    %vm1037 = vcmp.eq.f32.partialorder %v1036, 8.507059e+37
    %v1038 = vand.u32 %v1026, 2147483648
    %v1039 = vor.u32 1.1754944e-38, %v1038
    %v1040 = vsel %vm1037, %v1039, %v1035
    %v1041 = vmul.f32 1.0, %v1040
    %v1042 = vtanh.pop %v1022
    %v1043 = vmul.f32 %v1041, %v902
    %1045 = vrot.lane.b32.xlu0 %v1042, 32
    %v1046 = vpop.permute.xlu0 %1045
    %v1048 = vmul.f32 %v1041, %v1046
    %1050 = vrot.lane.b32.xlu0 %v1048, 32
    %v1051 = vpop.permute.xlu0 %1050
    %v1053 = vadd.f32 %v1043, %v1051
    %v1054 = vtanh.pop %v1053
    %1056 = vrot.lane.b32.xlu0 %v1054, 32
    %v1057 = vpop.permute.xlu0 %1056
    %v1059 = vmul.f32 %v1041, %v1057
    %1061 = vrot.lane.b32.xlu0 %v1059, 64
    %v1062 = vpop.permute.xlu0 %1061
    %1065 = vrot.lane.b32.xlu0 %v1019, 96
    %v1066 = vpop.permute.xlu0 %1065
    %v1068 = vsel %vm82, %v1062, %v1066
    %v1070 = vsel %vm314, %v1068, 0
    %1072 = vmatpush.msra.mxu0 0.0
    %1073 = vmatpush.msra.mxu0 0.0
    %1074 = vmatpush.msra.mxu0 0.0
    %1075 = vmatpush.msra.mxu0 0.0
    %1076 = vmatpush.msra.mxu0 0.0
    %1077 = vmatpush.msra.mxu0 0.0
    %1078 = vmatpush.msra.mxu0 0.0
    %1079 = vmatpush.msra.mxu0 0.0
    %1080 = vmatpush.msra.mxu0 %v267
    %1081 = vmatpush.msra.mxu0 %v264
    %1082 = vmatpush.msra.mxu0 %v261
    %1083 = vmatpush.msra.mxu0 %v258
    %1084 = vmatpush.msra.mxu0 %v255
    %1085 = vmatpush.msra.mxu0 %v252
    %1086 = vmatpush.msra.mxu0 %v249
    %1087 = vmatpush.msra.mxu0 %v246
    %1088 = vmatmul.f32.gmra.mxu0 %v1070
    %v1089 = vpop.f32.mrf.mxu0
    %v1090 = vadd.f32 0.0, %v1089
    %1091 = vdwg.mxu0
    %1092 = vmatpush.msra.mxu0 0.0
    %1093 = vmatpush.msra.mxu0 0.0
    %1094 = vmatpush.msra.mxu0 0.0
    %1095 = vmatpush.msra.mxu0 0.0
    %1096 = vmatpush.msra.mxu0 0.0
    %1097 = vmatpush.msra.mxu0 0.0
    %1098 = vmatpush.msra.mxu0 0.0
    %1099 = vmatpush.msra.mxu0 0.0
    %1100 = vmatpush.msra.mxu0 %v268
    %1101 = vmatpush.msra.mxu0 %v265
    %1102 = vmatpush.msra.mxu0 %v262
    %1103 = vmatpush.msra.mxu0 %v259
    %1104 = vmatpush.msra.mxu0 %v256
    %1105 = vmatpush.msra.mxu0 %v253
    %1106 = vmatpush.msra.mxu0 %v250
    %1107 = vmatpush.msra.mxu0 %v247
    %1108 = vmatmul.f32.gmra.mxu0 %v1070
    %v1109 = vpop.f32.mrf.mxu0
    %v1110 = vadd.f32 0.0, %v1109
    %1111 = vdwg.mxu0
    %1112 = vmatpush.msra.mxu0 0.0
    %1113 = vmatpush.msra.mxu0 0.0
    %1114 = vmatpush.msra.mxu0 0.0
    %1115 = vmatpush.msra.mxu0 0.0
    %1116 = vmatpush.msra.mxu0 0.0
    %1117 = vmatpush.msra.mxu0 0.0
    %1118 = vmatpush.msra.mxu0 0.0
    %1119 = vmatpush.msra.mxu0 0.0
    %1120 = vmatpush.msra.mxu0 %v269
    %1121 = vmatpush.msra.mxu0 %v266
    %1122 = vmatpush.msra.mxu0 %v263
    %1123 = vmatpush.msra.mxu0 %v260
    %1124 = vmatpush.msra.mxu0 %v257
    %1125 = vmatpush.msra.mxu0 %v254
    %1126 = vmatpush.msra.mxu0 %v251
    %1127 = vmatpush.msra.mxu0 %v248
    %1128 = vmatmul.f32.gmra.mxu0 %v1070
    %v1129 = vpop.f32.mrf.mxu0
    %v1130 = vadd.f32 0.0, %v1129
    %1131 = vdwg.mxu0
    %v1132 = vadd.f32 %v1090, %v1130
    %v1133 = vadd.f32 %v1132, %v270
    %v1134 = vxor.u32 %v1133, 2147483648
    %v1135 = vmul.f32 %v1134, 1.442695
    %v1136 = vpow.pop %v1135
    %v1137 = vadd.f32 %v1136, 1.0
    %v1138 = vrcp.pop %v1137
    %v1139 = vmul.f32 %v1137, %v1138
    %v1140 = vsub.f32 1.0, %v1139
    %v1141 = vmul.f32 %v1138, %v1140
    %v1142 = vadd.f32 %v1138, %v1141
    %vm1143 = vweird.f32 %v1137
    %vm1144 = vweird.f32 %v1138
    %vm1145 = vmor %vm1143, %vm1144
    %v1146 = vsel %vm1145, %v1138, %v1142
    %v1147 = vand.u32 2147483647, %v1137
    %vm1148 = vcmp.eq.f32.partialorder %v1147, 8.507059e+37
    %v1149 = vand.u32 %v1137, 2147483648
    %v1150 = vor.u32 1.1754944e-38, %v1149
    %v1151 = vsel %vm1148, %v1150, %v1146
    %v1152 = vmul.f32 1.0, %v1151
    %v1153 = vtanh.pop %v1133
    %v1154 = vmul.f32 %v1152, %v1013
    %1156 = vrot.lane.b32.xlu0 %v1153, 32
    %v1157 = vpop.permute.xlu0 %1156
    %v1159 = vmul.f32 %v1152, %v1157
    %1161 = vrot.lane.b32.xlu0 %v1159, 32
    %v1162 = vpop.permute.xlu0 %1161
    %v1164 = vadd.f32 %v1154, %v1162
    %v1165 = vtanh.pop %v1164
    %1167 = vrot.lane.b32.xlu0 %v1165, 32
    %v1168 = vpop.permute.xlu0 %1167
    %v1170 = vmul.f32 %v1152, %v1168
    %v1171 = vtanh.pop %v1170
    %v1172 = vmax.f32 %v1021, %v1171
    %v1173 = vadd.f32 %v224, %v1110
    %v1174 = vxor.u32 %v1173, 2147483648
    %v1175 = vmul.f32 %v1174, 1.442695
    %v1176 = vpow.pop %v1175
    %v1177 = vadd.f32 %v1176, 1.0
    %v1178 = vrcp.pop %v1177
    %v1179 = vmul.f32 %v1177, %v1178
    %v1180 = vsub.f32 1.0, %v1179
    %v1181 = vmul.f32 %v1178, %v1180
    %v1182 = vadd.f32 %v1178, %v1181
    %vm1183 = vweird.f32 %v1177
    %vm1184 = vweird.f32 %v1178
    %vm1185 = vmor %vm1183, %vm1184
    %v1186 = vsel %vm1185, %v1178, %v1182
    %v1187 = vand.u32 2147483647, %v1177
    %vm1188 = vcmp.eq.f32.partialorder %v1187, 8.507059e+37
    %v1189 = vand.u32 %v1177, 2147483648
    %v1190 = vor.u32 1.1754944e-38, %v1189
    %v1191 = vsel %vm1188, %v1190, %v1186
    %v1192 = vmul.f32 1.0, %v1191
    %v1193 = vtanh.pop %v1173
    %v1194 = vmul.f32 %v1192, %v1053
    %1196 = vrot.lane.b32.xlu0 %v1193, 32
    %v1197 = vpop.permute.xlu0 %1196
    %v1199 = vmul.f32 %v1192, %v1197
    %1201 = vrot.lane.b32.xlu0 %v1199, 32
    %v1202 = vpop.permute.xlu0 %1201
    %v1204 = vadd.f32 %v1194, %v1202
    %v1205 = vtanh.pop %v1204
    %1207 = vrot.lane.b32.xlu0 %v1205, 32
    %v1208 = vpop.permute.xlu0 %1207
    %v1210 = vmul.f32 %v1192, %v1208
    %1212 = vrot.lane.b32.xlu0 %v1210, 64
    %v1213 = vpop.permute.xlu0 %1212
    %1216 = vrot.lane.b32.xlu0 %v1170, 96
    %v1217 = vpop.permute.xlu0 %1216
    %v1219 = vsel %vm82, %v1213, %v1217
    %v1221 = vsel %vm314, %v1219, 0
    %1223 = vmatpush.msra.mxu0 0.0
    %1224 = vmatpush.msra.mxu0 0.0
    %1225 = vmatpush.msra.mxu0 0.0
    %1226 = vmatpush.msra.mxu0 0.0
    %1227 = vmatpush.msra.mxu0 0.0
    %1228 = vmatpush.msra.mxu0 0.0
    %1229 = vmatpush.msra.mxu0 0.0
    %1230 = vmatpush.msra.mxu0 0.0
    %1231 = vmatpush.msra.mxu0 %v267
    %1232 = vmatpush.msra.mxu0 %v264
    %1233 = vmatpush.msra.mxu0 %v261
    %1234 = vmatpush.msra.mxu0 %v258
    %1235 = vmatpush.msra.mxu0 %v255
    %1236 = vmatpush.msra.mxu0 %v252
    %1237 = vmatpush.msra.mxu0 %v249
    %1238 = vmatpush.msra.mxu0 %v246
    %1239 = vmatmul.f32.gmra.mxu0 %v1221
    %v1240 = vpop.f32.mrf.mxu0
    %v1241 = vadd.f32 0.0, %v1240
    %1242 = vdwg.mxu0
    %1243 = vmatpush.msra.mxu0 0.0
    %1244 = vmatpush.msra.mxu0 0.0
    %1245 = vmatpush.msra.mxu0 0.0
    %1246 = vmatpush.msra.mxu0 0.0
    %1247 = vmatpush.msra.mxu0 0.0
    %1248 = vmatpush.msra.mxu0 0.0
    %1249 = vmatpush.msra.mxu0 0.0
    %1250 = vmatpush.msra.mxu0 0.0
    %1251 = vmatpush.msra.mxu0 %v268
    %1252 = vmatpush.msra.mxu0 %v265
    %1253 = vmatpush.msra.mxu0 %v262
    %1254 = vmatpush.msra.mxu0 %v259
    %1255 = vmatpush.msra.mxu0 %v256
    %1256 = vmatpush.msra.mxu0 %v253
    %1257 = vmatpush.msra.mxu0 %v250
    %1258 = vmatpush.msra.mxu0 %v247
    %1259 = vmatmul.f32.gmra.mxu0 %v1221
    %v1260 = vpop.f32.mrf.mxu0
    %v1261 = vadd.f32 0.0, %v1260
    %1262 = vdwg.mxu0
    %1263 = vmatpush.msra.mxu0 0.0
    %1264 = vmatpush.msra.mxu0 0.0
    %1265 = vmatpush.msra.mxu0 0.0
    %1266 = vmatpush.msra.mxu0 0.0
    %1267 = vmatpush.msra.mxu0 0.0
    %1268 = vmatpush.msra.mxu0 0.0
    %1269 = vmatpush.msra.mxu0 0.0
    %1270 = vmatpush.msra.mxu0 0.0
    %1271 = vmatpush.msra.mxu0 %v269
    %1272 = vmatpush.msra.mxu0 %v266
    %1273 = vmatpush.msra.mxu0 %v263
    %1274 = vmatpush.msra.mxu0 %v260
    %1275 = vmatpush.msra.mxu0 %v257
    %1276 = vmatpush.msra.mxu0 %v254
    %1277 = vmatpush.msra.mxu0 %v251
    %1278 = vmatpush.msra.mxu0 %v248
    %1279 = vmatmul.f32.gmra.mxu0 %v1221
    %v1280 = vpop.f32.mrf.mxu0
    %v1281 = vadd.f32 0.0, %v1280
    %1282 = vdwg.mxu0
    %v1283 = vadd.f32 %v1241, %v1281
    %v1284 = vadd.f32 %v1283, %v270
    %v1285 = vxor.u32 %v1284, 2147483648
    %v1286 = vmul.f32 %v1285, 1.442695
    %v1287 = vpow.pop %v1286
    %v1288 = vadd.f32 %v1287, 1.0
    %v1289 = vrcp.pop %v1288
    %v1290 = vmul.f32 %v1288, %v1289
    %v1291 = vsub.f32 1.0, %v1290
    %v1292 = vmul.f32 %v1289, %v1291
    %v1293 = vadd.f32 %v1289, %v1292
    %vm1294 = vweird.f32 %v1288
    %vm1295 = vweird.f32 %v1289
    %vm1296 = vmor %vm1294, %vm1295
    %v1297 = vsel %vm1296, %v1289, %v1293
    %v1298 = vand.u32 2147483647, %v1288
    %vm1299 = vcmp.eq.f32.partialorder %v1298, 8.507059e+37
    %v1300 = vand.u32 %v1288, 2147483648
    %v1301 = vor.u32 1.1754944e-38, %v1300
    %v1302 = vsel %vm1299, %v1301, %v1297
    %v1303 = vmul.f32 1.0, %v1302
    %v1304 = vtanh.pop %v1284
    %v1305 = vmul.f32 %v1303, %v1164
    %1307 = vrot.lane.b32.xlu0 %v1304, 32
    %v1308 = vpop.permute.xlu0 %1307
    %v1310 = vmul.f32 %v1303, %v1308
    %1312 = vrot.lane.b32.xlu0 %v1310, 32
    %v1313 = vpop.permute.xlu0 %1312
    %v1315 = vadd.f32 %v1305, %v1313
    %v1316 = vtanh.pop %v1315
    %1318 = vrot.lane.b32.xlu0 %v1316, 32
    %v1319 = vpop.permute.xlu0 %1318
    %v1321 = vmul.f32 %v1303, %v1319
    %v1322 = vtanh.pop %v1321
    %v1323 = vmax.f32 %v1172, %v1322
    %v1324 = vadd.f32 %v244, %v1261
    %v1325 = vxor.u32 %v1324, 2147483648
    %v1326 = vmul.f32 %v1325, 1.442695
    %v1327 = vpow.pop %v1326
    %v1328 = vadd.f32 %v1327, 1.0
    %v1329 = vrcp.pop %v1328
    %v1330 = vmul.f32 %v1328, %v1329
    %v1331 = vsub.f32 1.0, %v1330
    %v1332 = vmul.f32 %v1329, %v1331
    %v1333 = vadd.f32 %v1329, %v1332
    %vm1334 = vweird.f32 %v1328
    %vm1335 = vweird.f32 %v1329
    %vm1336 = vmor %vm1334, %vm1335
    %v1337 = vsel %vm1336, %v1329, %v1333
    %v1338 = vand.u32 2147483647, %v1328
    %vm1339 = vcmp.eq.f32.partialorder %v1338, 8.507059e+37
    %v1340 = vand.u32 %v1328, 2147483648
    %v1341 = vor.u32 1.1754944e-38, %v1340
    %v1342 = vsel %vm1339, %v1341, %v1337
    %v1343 = vmul.f32 1.0, %v1342
    %v1344 = vtanh.pop %v1324
    %v1345 = vmul.f32 %v1343, %v1204
    %1347 = vrot.lane.b32.xlu0 %v1344, 32
    %v1348 = vpop.permute.xlu0 %1347
    %v1350 = vmul.f32 %v1343, %v1348
    %1352 = vrot.lane.b32.xlu0 %v1350, 32
    %v1353 = vpop.permute.xlu0 %1352
    %v1355 = vadd.f32 %v1345, %v1353
    %v1356 = vtanh.pop %v1355
    %1358 = vrot.lane.b32.xlu0 %v1356, 32
    %v1359 = vpop.permute.xlu0 %1358
    %v1361 = vmul.f32 %v1343, %v1359
    %1363 = vrot.lane.b32.xlu0 %v1361, 64
    %v1364 = vpop.permute.xlu0 %1363
    %1367 = vrot.lane.b32.xlu0 %v1321, 96
    %v1368 = vpop.permute.xlu0 %1367
    %v1370 = vsel %vm82, %v1364, %v1368
    %v1372 = vsel %vm314, %v1370, 0
    %1374 = vmatpush.msra.mxu0 0.0
    %1375 = vmatpush.msra.mxu0 0.0
    %1376 = vmatpush.msra.mxu0 0.0
    %1377 = vmatpush.msra.mxu0 0.0
    %1378 = vmatpush.msra.mxu0 0.0
    %1379 = vmatpush.msra.mxu0 0.0
    %1380 = vmatpush.msra.mxu0 0.0
    %1381 = vmatpush.msra.mxu0 0.0
    %1382 = vmatpush.msra.mxu0 %v267
    %1383 = vmatpush.msra.mxu0 %v264
    %1384 = vmatpush.msra.mxu0 %v261
    %1385 = vmatpush.msra.mxu0 %v258
    %1386 = vmatpush.msra.mxu0 %v255
    %1387 = vmatpush.msra.mxu0 %v252
    %1388 = vmatpush.msra.mxu0 %v249
    %1389 = vmatpush.msra.mxu0 %v246
    %1390 = vmatmul.f32.gmra.mxu0 %v1372
    %v1391 = vpop.f32.mrf.mxu0
    %v1392 = vadd.f32 0.0, %v1391
    %1393 = vdwg.mxu0
    %1394 = vmatpush.msra.mxu0 0.0
    %1395 = vmatpush.msra.mxu0 0.0
    %1396 = vmatpush.msra.mxu0 0.0
    %1397 = vmatpush.msra.mxu0 0.0
    %1398 = vmatpush.msra.mxu0 0.0
    %1399 = vmatpush.msra.mxu0 0.0
    %1400 = vmatpush.msra.mxu0 0.0
    %1401 = vmatpush.msra.mxu0 0.0
    %1402 = vmatpush.msra.mxu0 %v269
    %1403 = vmatpush.msra.mxu0 %v266
    %1404 = vmatpush.msra.mxu0 %v263
    %1405 = vmatpush.msra.mxu0 %v260
    %1406 = vmatpush.msra.mxu0 %v257
    %1407 = vmatpush.msra.mxu0 %v254
    %1408 = vmatpush.msra.mxu0 %v251
    %1409 = vmatpush.msra.mxu0 %v248
    %1410 = vmatmul.f32.gmra.mxu0 %v1372
    %v1411 = vpop.f32.mrf.mxu0
    %v1412 = vadd.f32 0.0, %v1411
    %1413 = vdwg.mxu0
    %v1414 = vadd.f32 %v1392, %v1412
    %v1415 = vadd.f32 %v1414, %v270
    %v1416 = vxor.u32 %v1415, 2147483648
    %v1417 = vmul.f32 %v1416, 1.442695
    %v1418 = vpow.pop %v1417
    %v1419 = vadd.f32 %v1418, 1.0
    %v1420 = vrcp.pop %v1419
    %v1421 = vmul.f32 %v1419, %v1420
    %v1422 = vsub.f32 1.0, %v1421
    %v1423 = vmul.f32 %v1420, %v1422
    %v1424 = vadd.f32 %v1420, %v1423
    %vm1425 = vweird.f32 %v1419
    %vm1426 = vweird.f32 %v1420
    %vm1427 = vmor %vm1425, %vm1426
    %v1428 = vsel %vm1427, %v1420, %v1424
    %v1429 = vand.u32 2147483647, %v1419
    %vm1430 = vcmp.eq.f32.partialorder %v1429, 8.507059e+37
    %v1431 = vand.u32 %v1419, 2147483648
    %v1432 = vor.u32 1.1754944e-38, %v1431
    %v1433 = vsel %vm1430, %v1432, %v1428
    %v1434 = vmul.f32 1.0, %v1433
    %v1435 = vtanh.pop %v1415
    %v1436 = vmul.f32 %v1434, %v1315
    %1438 = vrot.lane.b32.xlu0 %v1435, 32
    %v1439 = vpop.permute.xlu0 %1438
    %v1441 = vmul.f32 %v1434, %v1439
    %1443 = vrot.lane.b32.xlu0 %v1441, 32
    %v1444 = vpop.permute.xlu0 %1443
    %v1446 = vadd.f32 %v1436, %v1444
    %v1447 = vtanh.pop %v1446
    %1449 = vrot.lane.b32.xlu0 %v1447, 32
    %v1450 = vpop.permute.xlu0 %1449
    %v1452 = vmul.f32 %v1434, %v1450
    %v1453 = vtanh.pop %v1452
    %v1454 = vmax.f32 %v1323, %v1453
    %v1455 = vtanh.pop %v1454
    %v1456 = vld [vmem:[#allocation2 + $0x380] sm:$0xff]
    %v1457 = vld [vmem:[#allocation2 + $0x3c0] sm:$0xff]
    %v1458 = vld [vmem:[#allocation2 + $0x400] sm:$0xff]
    %v1459 = vld [vmem:[#allocation2 + $0x440] sm:$0xff]
    %v1460 = vld [vmem:[#allocation2 + $0x480] ss:$0 sm:$0xff]
    %1462 = vrot.lane.b32.xlu0 %v1455, 64
    %v1463 = vpop.permute.xlu0 %1462
    %v1464 = vsel %vm82, %v1463, 0
    %1466 = vmatpush.msra.mxu0 0.0
    %1467 = vmatpush.msra.mxu0 0.0
    %1468 = vmatpush.msra.mxu0 0.0
    %1469 = vmatpush.msra.mxu0 0.0
    %1470 = vmatpush.msra.mxu0 0.0
    %1471 = vmatpush.msra.mxu0 0.0
    %1472 = vmatpush.msra.mxu0 0.0
    %1473 = vmatpush.msra.mxu0 0.0
    %1474 = vmatpush.msra.mxu0 0.0
    %1475 = vmatpush.msra.mxu0 0.0
    %1476 = vmatpush.msra.mxu0 0.0
    %1477 = vmatpush.msra.mxu0 0.0
    %1478 = vmatpush.msra.mxu0 %v1459
    %1479 = vmatpush.msra.mxu0 %v1458
    %1480 = vmatpush.msra.mxu0 %v1457
    %1481 = vmatpush.msra.mxu0 %v1456
    %1482 = vmatmul.f32.gmra.mxu0 %v1464
    %v1483 = vpop.f32.mrf.mxu0
    %v1484 = vadd.f32 %v1460, %v1483
    %1485 = vdwg.mxu0
    %1486 = vst [vmem:[#allocation5] sm:$0x3] %v1484
    // Predicated region
    $region14: #{rnn_classifier_forward.1} parent=1 // pred_check
      _
    $region15: #{rnn_classifier_forward.1} parent=1 // pred_check_branch
      %1488 = sbr.rel (0) target = $region17
    $region16: #{rnn_classifier_forward.1} parent=1 // pred_region
      %1490 = vsyncadd [#allocation4], 0
      %s1492 = sshll.u32 [#allocation5], 4
      %s1493 = int_to_ptr.vmem [resolvable:$true] %s1492
      %s1494 = sshll.u32 %s2, 4
      %s1495 = int_to_ptr.hbm [resolvable:$true] %s1494
      %1497 = dma.vmem_to_hbm [thread:$0]  %s1493, 32, %s1495, [#allocation4]
    $region17: #{rnn_classifier_forward.1} parent=1 // pred_fallthru
      _
    // Predicated region
    $region18: #{rnn_classifier_forward.1} parent=1 // pred_check
      _
    $region19: #{rnn_classifier_forward.1} parent=1 // pred_check_branch
      %1499 = sbr.rel (0) target = $region21
    $region20: #{rnn_classifier_forward.1} parent=1 // pred_region
      %1501 = dma.done [#allocation4], 32
    $region21: #{rnn_classifier_forward.1} parent=1 // pred_fallthru
      _
    %1502 = vsyncpa [#allocation3], 1
    %1503 = vsyncpa [#allocation4], 1

</llo_original>
